<compile_context>
chip_gen: v7x
topology: tpu7x:2x2x1
jax: 0.10.0
libtpu: 0.0.40
codegen_flags: <defaults>
</compile_context>

<pallas_src>
import functools

import jax
import jax.numpy as jnp
from jax.experimental import pallas as pl
from jax.experimental.pallas import tpu as pltpu

F32 = jnp.float32
BF16 = jnp.bfloat16

B = 2            # batch
N = 128          # num_points per cloud (lane aligned)
BN = B * N       # batch stacked onto the lane axis -> 256-wide MXU RHS
H = 32           # hidden_dim  = diffusion_model.encoder.block3.conv2.out_channels
L = 16           # latent_dim  = guidance_encoder.to_latent[2].out_features
GF = 64          # guidance encoder per-point feature width
GH = 32          # guidance encoder to_latent hidden width
DT = 32          # time embedding dim
OUT_ROWS = 8     # xyz (3) padded to a full sublane group -> unmasked stores
LANES = 128

# ----------------------------------------------------------------------------
# Conceptual parameter shapes (what init_params creates).
# ----------------------------------------------------------------------------
_PARAM_SHAPES = {
    # guidance_encoder
    "g_w1": (GF, 3), "g_b1": (GF, 1), "g_w2": (GF, GF), "g_b2": (GF, 1),
    "g_wg": (GH, GF), "g_wf": (GH, 1), "g_bl1": (GH, 1),
    "g_wl2": (L, GH), "g_bl2": (L, 1),
    # diffusion encoder (block3.conv2 out_channels == H)
    "e_wb1": (H, 3), "e_bb1": (H, 1), "e_wt": (H, DT),
    "e_wb2": (H, H), "e_bb2": (H, 1),
    "e_w31": (H, H), "e_b31": (H, 1), "e_w32": (H, H), "e_b32": (H, 1),
    # guidance_projector: Linear(L,H) -> ReLU -> Linear(H, 2H)
    "p_w1": (H, L), "p_b1": (H, 1), "p_w2": (2 * H, H), "p_b2": (2 * H, 1),
    # decoder
    "d_w1": (H, 2 * H), "d_b1": (H, 1), "d_wt": (H, DT),
    "d_w2": (H, H), "d_b2": (H, 1), "d_w3": (3, H), "d_b3": (3, 1),
}

# ----------------------------------------------------------------------------
# Dense slab layout: name -> (row_off, lane_off, rows, cols).
#   Band A (rows   0- 63): 64-wide weights, two per lane band.
#   Band B (rows  64-135): 32-wide weights, four per lane band
#                          (includes the merged [e_wt; d_wt] time-cond block).
#   Band C (rows 144-207): all biases (one lane column each) + tiny weights.
# d_w3 / d_b3 are reserved with 8 rows (rows 3..7 stay zero) so the final conv
# writes a full (8, BN) unmasked output slab.
# ----------------------------------------------------------------------------
_LAYOUT = {
    # Band A
    "g_w2":  (0,    0, 64, 64),
    "g_wg":  (0,   64, 32, 64),
    "d_w1":  (32,  64, 32, 64),
    # Band B
    "p_w2":  (64,   0, 64, 32),
    "d_w3":  (128,  0, OUT_ROWS, 32),
    "wt_ed": (64,  32, 64, 32),     # stacked [e_wt; d_wt]
    "e_wb2": (64,  64, 32, 32),
    "e_w31": (96,  64, 32, 32),
    "e_w32": (64,  96, 32, 32),
    "d_w2":  (96,  96, 32, 32),
    # Band C
    "g_b1":  (144,  0, 64, 1),
    "g_b2":  (144,  1, 64, 1),
    "p_b2":  (144,  2, 64, 1),
    "g_wf":  (144,  3, 32, 1),
    "g_bl1": (144,  4, 32, 1),
    "g_bl2": (144,  5, 16, 1),
    "e_bb1": (144,  6, 32, 1),
    "e_bb2": (144,  7, 32, 1),
    "e_b31": (144,  8, 32, 1),
    "e_b32": (144,  9, 32, 1),
    "p_b1":  (144, 10, 32, 1),
    "d_b1":  (144, 11, 32, 1),
    "d_b2":  (144, 12, 32, 1),
    "d_b3":  (144, 13, OUT_ROWS, 1),
    "g_w1":  (144, 16, 64, 3),
    "e_wb1": (144, 20, 32, 3),
    "p_w1":  (144, 24, 32, 16),
    "g_wl2": (144, 40, 16, 32),
}
SLAB_ROWS = 208


def _check_layout():
    occ = set()
    for name, (r0, c0, rows, cols) in _LAYOUT.items():
        assert r0 % 8 == 0, name
        assert r0 + rows <= SLAB_ROWS and c0 + cols <= LANES, name
        for r in range(r0, r0 + rows):
            for c in range(c0, c0 + cols):
                assert (r, c) not in occ, f"slab overlap at {name} ({r},{c})"
                occ.add((r, c))


_check_layout()


def pack_params(pw):
    """Pack every weight/bias into one dense (SLAB_ROWS, 128) f32 slab."""
    vals = dict(pw)
    vals["wt_ed"] = jnp.concatenate([pw["e_wt"], pw["d_wt"]], axis=0)  # (2H, DT)
    slab = jnp.zeros((SLAB_ROWS, LANES), F32)
    for name, (r0, c0, _rows, _cols) in _LAYOUT.items():
        v = vals[name].astype(F32)
        slab = slab.at[r0:r0 + v.shape[0], c0:c0 + v.shape[1]].set(v)
    return slab


# ----------------------------------------------------------------------------
# Fused kernel: whole forward pass, whole batch, no grid (single invocation)
# ----------------------------------------------------------------------------

def fused_kernel(act_ref, temb_ref, slab_ref, frame_ref, out_ref):
    """act_ref: (8, BN) f32, rows 0:3 = x, rows 3:6 = prev_points;
    temb_ref: (DT, B) f32; slab_ref: (SLAB_ROWS, 128) f32;
    frame_ref: (B,) f32 in SMEM; out_ref: (OUT_ROWS, BN) f32, rows 0:3 valid."""

    def W(name):                                   # f32 weight slice
        r0, c0, rows, cols = _LAYOUT[name]
        return slab_ref[r0:r0 + rows, c0:c0 + cols]

    def Wm(name):                                  # bf16 matmul LHS
        return W(name).astype(BF16)

    def Bc(name):                                  # bias / column param (rows, 1)
        r0, c0, rows, _ = _LAYOUT[name]
        return slab_ref[r0:r0 + rows, c0:c0 + 1]

    dot = functools.partial(jnp.dot, preferred_element_type=F32)
    bf = lambda a: a.astype(BF16)

    def seg_max(a):                                # per-batch max pool (C,BN)->(C,B)
        return jnp.concatenate(
            [jnp.max(a[:, b * N:(b + 1) * N], axis=-1, keepdims=True)
             for b in range(B)], axis=-1)

    # per-batch column -> per-point via masked VPU selects (no lane concat)
    lane_h = jax.lax.broadcasted_iota(jnp.int32, (H, BN), 1)

    def expand_h(v):                               # (H, B) -> (H, BN)
        out = jnp.broadcast_to(v[:, 0:1], (H, BN))
        for b in range(1, B):
            out = jnp.where(lane_h >= b * N,
                            jnp.broadcast_to(v[:, b:b + 1], (H, BN)), out)
        return out

    acts = act_ref[...]                            # (8, BN)
    x = acts[0:3, :]
    p = acts[3:6, :]
    temb = temb_ref[...]                           # (DT, B)

    # ---- guidance_encoder(prev_points, frame_num) -> (L, B) latent ---------
    gw1 = W("g_w1")                                # K=3: 3 VPU broadcast-FMAs
    h = (gw1[:, 0:1] * p[0:1, :] + gw1[:, 1:2] * p[1:2, :]
         + gw1[:, 2:3] * p[2:3, :]) + Bc("g_b1")
    h = jnp.maximum(h, 0.0)                                            # (GF, BN)
    h = jnp.maximum(dot(Wm("g_w2"), bf(h)) + Bc("g_b2"), 0.0)          # (GF, BN)
    g = seg_max(h)                                                     # (GF, B)

    # frame conditioning column without lane concatenates
    lane_b = jax.lax.broadcasted_iota(jnp.int32, (GH, B), 1)
    fsel = jnp.full((GH, B), frame_ref[0] * 0.01, dtype=F32)
    for b in range(1, B):
        fsel = jnp.where(lane_b >= b, frame_ref[b] * 0.01, fsel)
    fcol = Bc("g_wf") * fsel                                           # (GH, B)

    z = jnp.maximum(dot(Wm("g_wg"), bf(g)) + fcol + Bc("g_bl1"), 0.0)  # (GH, B)
    lat = dot(Wm("g_wl2"), bf(z)) + Bc("g_bl2")                        # (L, B)

    # ---- guidance_projector: Linear(L,H) -> ReLU -> Linear(H, 2H) ----------
    g1 = jnp.maximum(dot(Wm("p_w1"), bf(lat)) + Bc("p_b1"), 0.0)       # (H, B)
    g2 = dot(Wm("p_w2"), bf(g1)) + Bc("p_b2")                          # (2H, B)
    g2_loc = g2[:H, :]
    g2_glob = g2[H:, :]

    # ---- merged time conditioning: one dot for encoder + decoder -----------
    tcond = dot(Wm("wt_ed"), bf(temb))                                 # (2H, B)
    tcond_e = tcond[:H, :]
    tcond_d = tcond[H:, :]

    # ---- diffusion_model.encoder(x, t): local (H,BN) + global (H,B) --------
    ew1 = W("e_wb1")
    h1 = (ew1[:, 0:1] * x[0:1, :] + ew1[:, 1:2] * x[1:2, :]
          + ew1[:, 2:3] * x[2:3, :]) + Bc("e_bb1") + expand_h(tcond_e)
    h1 = jnp.maximum(h1, 0.0)                                          # (H, BN)
    h2 = jnp.maximum(dot(Wm("e_wb2"), bf(h1)) + Bc("e_bb2"), 0.0)
    h3 = jnp.maximum(dot(Wm("e_w31"), bf(h2)) + Bc("e_b31"), 0.0)
    local = dot(Wm("e_w32"), bf(h3)) + Bc("e_b32")                     # (H, BN)
    gmax = seg_max(local)                                              # (H, B)

    # ---- decoder(features + guidance, time_emb) ----------------------------
    # [local || broadcast(gmax)] + broadcast(g2): global halves are rank-1
    # over N, so fold them (plus time cond) into one per-batch (H,B) column
    # with a single MXU push of the full d_w1.
    wd1 = Wm("d_w1")                                                   # (H, 2H)
    rhs_col = bf(jnp.concatenate([g2_loc, g2_glob + gmax], axis=0))    # (2H, B)
    col = dot(wd1, rhs_col) + tcond_d                                  # (H, B)
    d1 = jnp.maximum(dot(wd1[:, :H], bf(local)) + expand_h(col) + Bc("d_b1"), 0.0)
    d2 = jnp.maximum(dot(Wm("d_w2"), bf(d1)) + Bc("d_b2"), 0.0)        # (H, BN)

    # final conv padded to 8 output rows (reserved slab rows are zero)
    out_ref[...] = dot(Wm("d_w3"), bf(d2)) + Bc("d_b3")                # (8, BN)


# ----------------------------------------------------------------------------
# Wrapper (plain-JAX glue: time_mlp, layout plumbing)
# ----------------------------------------------------------------------------

def sinusoidal_embedding(t, dim):
    half = dim // 2
    freqs = jnp.exp(-jnp.log(10000.0) * jnp.arange(half, dtype=F32) / (half - 1))
    args = t[:, None] * freqs[None, :]
    return jnp.concatenate([jnp.sin(args), jnp.cos(args)], axis=-1)


def init_params(key):
    shapes = dict(_PARAM_SHAPES)
    shapes.update({"t_w": (DT, DT), "t_b": (DT,)})   # time_mlp linear (glue)
    keys = jax.random.split(key, len(shapes))
    return {name: 0.1 * jax.random.normal(k, shp, dtype=F32)
            for (name, shp), k in zip(shapes.items(), keys)}


@jax.jit
def guided_point_diffusion_forward(x, t, prev_points, frame_num, pw, slab):
    """Mirrors GuidedPointDiffusion.forward with prev_points/frame_num given."""
    # diffusion_model.time_mlp(t): sinusoidal + Linear + ReLU (cheap glue)
    temb = sinusoidal_embedding(t.astype(F32), DT)                 # (B, DT)
    temb = jnp.maximum(temb @ pw["t_w"].T + pw["t_b"], 0.0)
    temb_t = temb.T                                                # (DT, B)

    # stack the batch onto the lane axis and pack x/prev into one (8, BN) slab
    x2 = jnp.transpose(x, (1, 0, 2)).reshape(3, BN)
    prev2 = jnp.transpose(prev_points, (1, 0, 2)).reshape(3, BN)
    acts = jnp.concatenate([x2, prev2, jnp.zeros((2, BN), F32)], axis=0)
    frame_f = frame_num.astype(F32)                                # (B,) SMEM

    out8 = pl.pallas_call(
        fused_kernel,
        out_shape=jax.ShapeDtypeStruct((OUT_ROWS, BN), F32),
        in_specs=[
            pl.BlockSpec(memory_space=pltpu.MemorySpace.VMEM),     # acts (8, BN)
            pl.BlockSpec(memory_space=pltpu.MemorySpace.VMEM),     # temb (DT, B)
            pl.BlockSpec(memory_space=pltpu.MemorySpace.VMEM),     # slab
            pl.BlockSpec(memory_space=pltpu.MemorySpace.SMEM),     # frame_num
        ],
        out_specs=pl.BlockSpec(memory_space=pltpu.MemorySpace.VMEM),
    )(acts, temb_t, slab, frame_f)

    # (8, B*N) -> (B, 3, N), dropping the padded channels
    return jnp.transpose(out8[:3].reshape(3, B, N), (1, 0, 2))


if __name__ == "__main__":
    key = jax.random.PRNGKey(0)
    kx, kp, kt, kf, kw = jax.random.split(key, 5)
    x = jax.random.normal(kx, (B, 3, N), dtype=F32)
    prev_points = jax.random.normal(kp, (B, 3, N), dtype=F32)
    t = jax.random.randint(kt, (B,), 0, 1000)
    frame_num = jax.random.randint(kf, (B,), 0, 100)
    params = init_params(kw)
    slab = pack_params(params)

    noise_pred = guided_point_diffusion_forward(
        x, t, prev_points, frame_num, params, slab)
    noise_pred = jax.block_until_ready(noise_pred)
    assert noise_pred.shape == (B, 3, N), noise_pred.shape
    assert bool(jnp.all(jnp.isfinite(noise_pred)))
    print("KERNEL_OK")
</pallas_src>

<mosaic_0001>
module attributes {stable_mosaic.version = 11 : i64} {
  func.func @fused_kernel(%arg0: memref<8x256xf32, #tpu.memory_space<vmem>>, %arg1: memref<32x2xf32, #tpu.memory_space<vmem>>, %arg2: memref<208x128xf32, #tpu.memory_space<vmem>>, %arg3: memref<2xf32, #tpu.memory_space<smem>>, %arg4: memref<8x256xf32, #tpu.memory_space<vmem>>) attributes {dimension_semantics = [], scalar_prefetch = 0 : i64, scratch_operands = 0 : i64, tpu.core_type = #tpu.core_type<tc>} {
    %0 = tpu.iota {dimensions = array<i32: 1>} : vector<32x256xi32>
    %c0 = arith.constant 0 : index
    %c0_0 = arith.constant 0 : index
    %1 = vector.load %arg0[%c0, %c0_0] : memref<8x256xf32, #tpu.memory_space<vmem>>, vector<8x256xf32>
    %2 = vector.extract_strided_slice %1 {offsets = [0, 0], sizes = [3, 256], strides = [1, 1]} : vector<8x256xf32> to vector<3x256xf32>
    %3 = vector.extract_strided_slice %1 {offsets = [3, 0], sizes = [3, 256], strides = [1, 1]} : vector<8x256xf32> to vector<3x256xf32>
    %c0_1 = arith.constant 0 : index
    %c0_2 = arith.constant 0 : index
    %4 = vector.load %arg1[%c0_1, %c0_2] : memref<32x2xf32, #tpu.memory_space<vmem>>, vector<32x2xf32>
    %c144 = arith.constant 144 : index
    %c16 = arith.constant 16 : index
    %5 = vector.load %arg2[%c144, %c16] : memref<208x128xf32, #tpu.memory_space<vmem>>, vector<64x3xf32>
    %6 = vector.extract_strided_slice %5 {offsets = [0, 0], sizes = [64, 1], strides = [1, 1]} : vector<64x3xf32> to vector<64x1xf32>
    %7 = vector.extract_strided_slice %3 {offsets = [0, 0], sizes = [1, 256], strides = [1, 1]} : vector<3x256xf32> to vector<1x256xf32>
    %8 = vector.broadcast %6 : vector<64x1xf32> to vector<64x256xf32>
    %9 = vector.broadcast %7 : vector<1x256xf32> to vector<64x256xf32>
    %10 = arith.mulf %8, %9 : vector<64x256xf32>
    %11 = vector.extract_strided_slice %5 {offsets = [0, 1], sizes = [64, 1], strides = [1, 1]} : vector<64x3xf32> to vector<64x1xf32>
    %12 = vector.extract_strided_slice %3 {offsets = [1, 0], sizes = [1, 256], strides = [1, 1]} : vector<3x256xf32> to vector<1x256xf32>
    %13 = vector.broadcast %11 : vector<64x1xf32> to vector<64x256xf32>
    %14 = vector.broadcast %12 : vector<1x256xf32> to vector<64x256xf32>
    %15 = arith.mulf %13, %14 : vector<64x256xf32>
    %16 = arith.addf %10, %15 : vector<64x256xf32>
    %17 = vector.extract_strided_slice %5 {offsets = [0, 2], sizes = [64, 1], strides = [1, 1]} : vector<64x3xf32> to vector<64x1xf32>
    %18 = vector.extract_strided_slice %3 {offsets = [2, 0], sizes = [1, 256], strides = [1, 1]} : vector<3x256xf32> to vector<1x256xf32>
    %19 = vector.broadcast %17 : vector<64x1xf32> to vector<64x256xf32>
    %20 = vector.broadcast %18 : vector<1x256xf32> to vector<64x256xf32>
    %21 = arith.mulf %19, %20 : vector<64x256xf32>
    %22 = arith.addf %16, %21 : vector<64x256xf32>
    %c144_3 = arith.constant 144 : index
    %c0_4 = arith.constant 0 : index
    %23 = vector.load %arg2[%c144_3, %c0_4] : memref<208x128xf32, #tpu.memory_space<vmem>>, vector<64x1xf32>
    %24 = vector.broadcast %23 : vector<64x1xf32> to vector<64x256xf32>
    %25 = arith.addf %22, %24 : vector<64x256xf32>
    %cst = arith.constant 0.000000e+00 : f32
    %26 = vector.broadcast %cst : f32 to vector<64x256xf32>
    %27 = arith.maximumf %25, %26 : vector<64x256xf32>
    %c0_5 = arith.constant 0 : index
    %c0_6 = arith.constant 0 : index
    %28 = vector.load %arg2[%c0_5, %c0_6] : memref<208x128xf32, #tpu.memory_space<vmem>>, vector<64x64xf32>
    %29 = arith.truncf %28 : vector<64x64xf32> to vector<64x64xbf16>
    %30 = arith.truncf %27 : vector<64x256xf32> to vector<64x256xbf16>
    %cst_7 = arith.constant dense<0.000000e+00> : vector<64x256xf32>
    %31 = tpu.matmul %29, %30, %cst_7 {dimension_numbers = #tpu.dot_dimension_numbers<[1], [0], [0], [1], [0, 0, 1, 1], [], []>} : vector<64x64xbf16>, vector<64x256xbf16>, vector<64x256xf32> -> vector<64x256xf32>
    %c144_8 = arith.constant 144 : index
    %c1 = arith.constant 1 : index
    %32 = vector.load %arg2[%c144_8, %c1] : memref<208x128xf32, #tpu.memory_space<vmem>>, vector<64x1xf32>
    %33 = vector.broadcast %32 : vector<64x1xf32> to vector<64x256xf32>
    %34 = arith.addf %31, %33 : vector<64x256xf32>
    %cst_9 = arith.constant 0.000000e+00 : f32
    %35 = vector.broadcast %cst_9 : f32 to vector<64x256xf32>
    %36 = arith.maximumf %34, %35 : vector<64x256xf32>
    %37 = vector.extract_strided_slice %36 {offsets = [0, 0], sizes = [64, 128], strides = [1, 1]} : vector<64x256xf32> to vector<64x128xf32>
    %cst_10 = arith.constant dense<0xFF800000> : vector<64xf32>
    %38 = vector.multi_reduction <maximumf>, %37, %cst_10 [1] : vector<64x128xf32> to vector<64xf32>
    %39 = vector.shape_cast %38 : vector<64xf32> to vector<64x1xf32>
    %40 = vector.extract_strided_slice %36 {offsets = [0, 128], sizes = [64, 128], strides = [1, 1]} : vector<64x256xf32> to vector<64x128xf32>
    %cst_11 = arith.constant dense<0xFF800000> : vector<64xf32>
    %41 = vector.multi_reduction <maximumf>, %40, %cst_11 [1] : vector<64x128xf32> to vector<64xf32>
    %42 = vector.shape_cast %41 : vector<64xf32> to vector<64x1xf32>
    %43 = tpu.concatenate %39, %42 in 1 : vector<64x1xf32>, vector<64x1xf32> -> vector<64x2xf32>
    %44 = tpu.iota {dimensions = array<i32: 1>} : vector<32x2xi32>
    %c0_12 = arith.constant 0 : index
    %45 = memref.load %arg3[%c0_12] : memref<2xf32, #tpu.memory_space<smem>>
    %cst_13 = arith.constant 0.00999999977 : f32
    %46 = arith.mulf %45, %cst_13 : f32
    %47 = vector.broadcast %46 : f32 to vector<32x2xf32>
    %c1_i32 = arith.constant 1 : i32
    %48 = vector.broadcast %c1_i32 : i32 to vector<32x2xi32>
    %49 = arith.cmpi sge, %44, %48 : vector<32x2xi32>
    %c1_14 = arith.constant 1 : index
    %50 = memref.load %arg3[%c1_14] : memref<2xf32, #tpu.memory_space<smem>>
    %cst_15 = arith.constant 0.00999999977 : f32
    %51 = arith.mulf %50, %cst_15 : f32
    %52 = vector.broadcast %51 : f32 to vector<32x2xf32>
    %53 = arith.select %49, %52, %47 : vector<32x2xi1>, vector<32x2xf32>
    %c144_16 = arith.constant 144 : index
    %c3 = arith.constant 3 : index
    %54 = vector.load %arg2[%c144_16, %c3] : memref<208x128xf32, #tpu.memory_space<vmem>>, vector<32x1xf32>
    %55 = vector.broadcast %54 : vector<32x1xf32> to vector<32x2xf32>
    %56 = arith.mulf %55, %53 : vector<32x2xf32>
    %c0_17 = arith.constant 0 : index
    %c64 = arith.constant 64 : index
    %57 = vector.load %arg2[%c0_17, %c64] : memref<208x128xf32, #tpu.memory_space<vmem>>, vector<32x64xf32>
    %58 = arith.truncf %57 : vector<32x64xf32> to vector<32x64xbf16>
    %59 = arith.truncf %43 : vector<64x2xf32> to vector<64x2xbf16>
    %cst_18 = arith.constant dense<0.000000e+00> : vector<32x2xf32>
    %60 = tpu.matmul %58, %59, %cst_18 {dimension_numbers = #tpu.dot_dimension_numbers<[1], [0], [0], [1], [0, 0, 1, 1], [], []>} : vector<32x64xbf16>, vector<64x2xbf16>, vector<32x2xf32> -> vector<32x2xf32>
    %61 = arith.addf %60, %56 : vector<32x2xf32>
    %c144_19 = arith.constant 144 : index
    %c4 = arith.constant 4 : index
    %62 = vector.load %arg2[%c144_19, %c4] : memref<208x128xf32, #tpu.memory_space<vmem>>, vector<32x1xf32>
    %63 = vector.broadcast %62 : vector<32x1xf32> to vector<32x2xf32>
    %64 = arith.addf %61, %63 : vector<32x2xf32>
    %cst_20 = arith.constant 0.000000e+00 : f32
    %65 = vector.broadcast %cst_20 : f32 to vector<32x2xf32>
    %66 = arith.maximumf %64, %65 : vector<32x2xf32>
    %c144_21 = arith.constant 144 : index
    %c40 = arith.constant 40 : index
    %67 = vector.load %arg2[%c144_21, %c40] : memref<208x128xf32, #tpu.memory_space<vmem>>, vector<16x32xf32>
    %68 = arith.truncf %67 : vector<16x32xf32> to vector<16x32xbf16>
    %69 = arith.truncf %66 : vector<32x2xf32> to vector<32x2xbf16>
    %cst_22 = arith.constant dense<0.000000e+00> : vector<16x2xf32>
    %70 = tpu.matmul %68, %69, %cst_22 {dimension_numbers = #tpu.dot_dimension_numbers<[1], [0], [0], [1], [0, 0, 1, 1], [], []>} : vector<16x32xbf16>, vector<32x2xbf16>, vector<16x2xf32> -> vector<16x2xf32>
    %c144_23 = arith.constant 144 : index
    %c5 = arith.constant 5 : index
    %71 = vector.load %arg2[%c144_23, %c5] : memref<208x128xf32, #tpu.memory_space<vmem>>, vector<16x1xf32>
    %72 = vector.broadcast %71 : vector<16x1xf32> to vector<16x2xf32>
    %73 = arith.addf %70, %72 : vector<16x2xf32>
    %c144_24 = arith.constant 144 : index
    %c24 = arith.constant 24 : index
    %74 = vector.load %arg2[%c144_24, %c24] : memref<208x128xf32, #tpu.memory_space<vmem>>, vector<32x16xf32>
    %75 = arith.truncf %74 : vector<32x16xf32> to vector<32x16xbf16>
    %76 = arith.truncf %73 : vector<16x2xf32> to vector<16x2xbf16>
    %cst_25 = arith.constant dense<0.000000e+00> : vector<32x2xf32>
    %77 = tpu.matmul %75, %76, %cst_25 {dimension_numbers = #tpu.dot_dimension_numbers<[1], [0], [0], [1], [0, 0, 1, 1], [], []>} : vector<32x16xbf16>, vector<16x2xbf16>, vector<32x2xf32> -> vector<32x2xf32>
    %c144_26 = arith.constant 144 : index
    %c10 = arith.constant 10 : index
    %78 = vector.load %arg2[%c144_26, %c10] : memref<208x128xf32, #tpu.memory_space<vmem>>, vector<32x1xf32>
    %79 = vector.broadcast %78 : vector<32x1xf32> to vector<32x2xf32>
    %80 = arith.addf %77, %79 : vector<32x2xf32>
    %cst_27 = arith.constant 0.000000e+00 : f32
    %81 = vector.broadcast %cst_27 : f32 to vector<32x2xf32>
    %82 = arith.maximumf %80, %81 : vector<32x2xf32>
    %c64_28 = arith.constant 64 : index
    %c0_29 = arith.constant 0 : index
    %83 = vector.load %arg2[%c64_28, %c0_29] : memref<208x128xf32, #tpu.memory_space<vmem>>, vector<64x32xf32>
    %84 = arith.truncf %83 : vector<64x32xf32> to vector<64x32xbf16>
    %85 = arith.truncf %82 : vector<32x2xf32> to vector<32x2xbf16>
    %cst_30 = arith.constant dense<0.000000e+00> : vector<64x2xf32>
    %86 = tpu.matmul %84, %85, %cst_30 {dimension_numbers = #tpu.dot_dimension_numbers<[1], [0], [0], [1], [0, 0, 1, 1], [], []>} : vector<64x32xbf16>, vector<32x2xbf16>, vector<64x2xf32> -> vector<64x2xf32>
    %c144_31 = arith.constant 144 : index
    %c2 = arith.constant 2 : index
    %87 = vector.load %arg2[%c144_31, %c2] : memref<208x128xf32, #tpu.memory_space<vmem>>, vector<64x1xf32>
    %88 = vector.broadcast %87 : vector<64x1xf32> to vector<64x2xf32>
    %89 = arith.addf %86, %88 : vector<64x2xf32>
    %90 = vector.extract_strided_slice %89 {offsets = [0, 0], sizes = [32, 2], strides = [1, 1]} : vector<64x2xf32> to vector<32x2xf32>
    %91 = vector.extract_strided_slice %89 {offsets = [32, 0], sizes = [32, 2], strides = [1, 1]} : vector<64x2xf32> to vector<32x2xf32>
    %c64_32 = arith.constant 64 : index
    %c32 = arith.constant 32 : index
    %92 = vector.load %arg2[%c64_32, %c32] : memref<208x128xf32, #tpu.memory_space<vmem>>, vector<64x32xf32>
    %93 = arith.truncf %92 : vector<64x32xf32> to vector<64x32xbf16>
    %94 = arith.truncf %4 : vector<32x2xf32> to vector<32x2xbf16>
    %cst_33 = arith.constant dense<0.000000e+00> : vector<64x2xf32>
    %95 = tpu.matmul %93, %94, %cst_33 {dimension_numbers = #tpu.dot_dimension_numbers<[1], [0], [0], [1], [0, 0, 1, 1], [], []>} : vector<64x32xbf16>, vector<32x2xbf16>, vector<64x2xf32> -> vector<64x2xf32>
    %96 = vector.extract_strided_slice %95 {offsets = [0, 0], sizes = [32, 2], strides = [1, 1]} : vector<64x2xf32> to vector<32x2xf32>
    %97 = vector.extract_strided_slice %95 {offsets = [32, 0], sizes = [32, 2], strides = [1, 1]} : vector<64x2xf32> to vector<32x2xf32>
    %c144_34 = arith.constant 144 : index
    %c20 = arith.constant 20 : index
    %98 = vector.load %arg2[%c144_34, %c20] : memref<208x128xf32, #tpu.memory_space<vmem>>, vector<32x3xf32>
    %99 = vector.extract_strided_slice %98 {offsets = [0, 0], sizes = [32, 1], strides = [1, 1]} : vector<32x3xf32> to vector<32x1xf32>
    %100 = vector.extract_strided_slice %2 {offsets = [0, 0], sizes = [1, 256], strides = [1, 1]} : vector<3x256xf32> to vector<1x256xf32>
    %101 = vector.broadcast %99 : vector<32x1xf32> to vector<32x256xf32>
    %102 = vector.broadcast %100 : vector<1x256xf32> to vector<32x256xf32>
    %103 = arith.mulf %101, %102 : vector<32x256xf32>
    %104 = vector.extract_strided_slice %98 {offsets = [0, 1], sizes = [32, 1], strides = [1, 1]} : vector<32x3xf32> to vector<32x1xf32>
    %105 = vector.extract_strided_slice %2 {offsets = [1, 0], sizes = [1, 256], strides = [1, 1]} : vector<3x256xf32> to vector<1x256xf32>
    %106 = vector.broadcast %104 : vector<32x1xf32> to vector<32x256xf32>
    %107 = vector.broadcast %105 : vector<1x256xf32> to vector<32x256xf32>
    %108 = arith.mulf %106, %107 : vector<32x256xf32>
    %109 = arith.addf %103, %108 : vector<32x256xf32>
    %110 = vector.extract_strided_slice %98 {offsets = [0, 2], sizes = [32, 1], strides = [1, 1]} : vector<32x3xf32> to vector<32x1xf32>
    %111 = vector.extract_strided_slice %2 {offsets = [2, 0], sizes = [1, 256], strides = [1, 1]} : vector<3x256xf32> to vector<1x256xf32>
    %112 = vector.broadcast %110 : vector<32x1xf32> to vector<32x256xf32>
    %113 = vector.broadcast %111 : vector<1x256xf32> to vector<32x256xf32>
    %114 = arith.mulf %112, %113 : vector<32x256xf32>
    %115 = arith.addf %109, %114 : vector<32x256xf32>
    %c144_35 = arith.constant 144 : index
    %c6 = arith.constant 6 : index
    %116 = vector.load %arg2[%c144_35, %c6] : memref<208x128xf32, #tpu.memory_space<vmem>>, vector<32x1xf32>
    %117 = vector.broadcast %116 : vector<32x1xf32> to vector<32x256xf32>
    %118 = arith.addf %115, %117 : vector<32x256xf32>
    %119 = vector.extract_strided_slice %96 {offsets = [0, 0], sizes = [32, 1], strides = [1, 1]} : vector<32x2xf32> to vector<32x1xf32>
    %120 = vector.shape_cast %119 : vector<32x1xf32> to vector<32x1xf32>
    %121 = vector.broadcast %120 : vector<32x1xf32> to vector<32x256xf32>
    %c128_i32 = arith.constant 128 : i32
    %122 = vector.broadcast %c128_i32 : i32 to vector<32x256xi32>
    %123 = arith.cmpi sge, %0, %122 : vector<32x256xi32>
    %124 = vector.extract_strided_slice %96 {offsets = [0, 1], sizes = [32, 1], strides = [1, 1]} : vector<32x2xf32> to vector<32x1xf32>
    %125 = vector.shape_cast %124 : vector<32x1xf32> to vector<32x1xf32>
    %126 = vector.broadcast %125 : vector<32x1xf32> to vector<32x256xf32>
    %127 = arith.select %123, %126, %121 : vector<32x256xi1>, vector<32x256xf32>
    %128 = arith.addf %118, %127 : vector<32x256xf32>
    %cst_36 = arith.constant 0.000000e+00 : f32
    %129 = vector.broadcast %cst_36 : f32 to vector<32x256xf32>
    %130 = arith.maximumf %128, %129 : vector<32x256xf32>
    %c64_37 = arith.constant 64 : index
    %c64_38 = arith.constant 64 : index
    %131 = vector.load %arg2[%c64_37, %c64_38] : memref<208x128xf32, #tpu.memory_space<vmem>>, vector<32x32xf32>
    %132 = arith.truncf %131 : vector<32x32xf32> to vector<32x32xbf16>
    %133 = arith.truncf %130 : vector<32x256xf32> to vector<32x256xbf16>
    %cst_39 = arith.constant dense<0.000000e+00> : vector<32x256xf32>
    %134 = tpu.matmul %132, %133, %cst_39 {dimension_numbers = #tpu.dot_dimension_numbers<[1], [0], [0], [1], [0, 0, 1, 1], [], []>} : vector<32x32xbf16>, vector<32x256xbf16>, vector<32x256xf32> -> vector<32x256xf32>
    %c144_40 = arith.constant 144 : index
    %c7 = arith.constant 7 : index
    %135 = vector.load %arg2[%c144_40, %c7] : memref<208x128xf32, #tpu.memory_space<vmem>>, vector<32x1xf32>
    %136 = vector.broadcast %135 : vector<32x1xf32> to vector<32x256xf32>
    %137 = arith.addf %134, %136 : vector<32x256xf32>
    %cst_41 = arith.constant 0.000000e+00 : f32
    %138 = vector.broadcast %cst_41 : f32 to vector<32x256xf32>
    %139 = arith.maximumf %137, %138 : vector<32x256xf32>
    %c96 = arith.constant 96 : index
    %c64_42 = arith.constant 64 : index
    %140 = vector.load %arg2[%c96, %c64_42] : memref<208x128xf32, #tpu.memory_space<vmem>>, vector<32x32xf32>
    %141 = arith.truncf %140 : vector<32x32xf32> to vector<32x32xbf16>
    %142 = arith.truncf %139 : vector<32x256xf32> to vector<32x256xbf16>
    %cst_43 = arith.constant dense<0.000000e+00> : vector<32x256xf32>
    %143 = tpu.matmul %141, %142, %cst_43 {dimension_numbers = #tpu.dot_dimension_numbers<[1], [0], [0], [1], [0, 0, 1, 1], [], []>} : vector<32x32xbf16>, vector<32x256xbf16>, vector<32x256xf32> -> vector<32x256xf32>
    %c144_44 = arith.constant 144 : index
    %c8 = arith.constant 8 : index
    %144 = vector.load %arg2[%c144_44, %c8] : memref<208x128xf32, #tpu.memory_space<vmem>>, vector<32x1xf32>
    %145 = vector.broadcast %144 : vector<32x1xf32> to vector<32x256xf32>
    %146 = arith.addf %143, %145 : vector<32x256xf32>
    %cst_45 = arith.constant 0.000000e+00 : f32
    %147 = vector.broadcast %cst_45 : f32 to vector<32x256xf32>
    %148 = arith.maximumf %146, %147 : vector<32x256xf32>
    %c64_46 = arith.constant 64 : index
    %c96_47 = arith.constant 96 : index
    %149 = vector.load %arg2[%c64_46, %c96_47] : memref<208x128xf32, #tpu.memory_space<vmem>>, vector<32x32xf32>
    %150 = arith.truncf %149 : vector<32x32xf32> to vector<32x32xbf16>
    %151 = arith.truncf %148 : vector<32x256xf32> to vector<32x256xbf16>
    %cst_48 = arith.constant dense<0.000000e+00> : vector<32x256xf32>
    %152 = tpu.matmul %150, %151, %cst_48 {dimension_numbers = #tpu.dot_dimension_numbers<[1], [0], [0], [1], [0, 0, 1, 1], [], []>} : vector<32x32xbf16>, vector<32x256xbf16>, vector<32x256xf32> -> vector<32x256xf32>
    %c144_49 = arith.constant 144 : index
    %c9 = arith.constant 9 : index
    %153 = vector.load %arg2[%c144_49, %c9] : memref<208x128xf32, #tpu.memory_space<vmem>>, vector<32x1xf32>
    %154 = vector.broadcast %153 : vector<32x1xf32> to vector<32x256xf32>
    %155 = arith.addf %152, %154 : vector<32x256xf32>
    %156 = vector.extract_strided_slice %155 {offsets = [0, 0], sizes = [32, 128], strides = [1, 1]} : vector<32x256xf32> to vector<32x128xf32>
    %cst_50 = arith.constant dense<0xFF800000> : vector<32xf32>
    %157 = vector.multi_reduction <maximumf>, %156, %cst_50 [1] : vector<32x128xf32> to vector<32xf32>
    %158 = vector.shape_cast %157 : vector<32xf32> to vector<32x1xf32>
    %159 = vector.extract_strided_slice %155 {offsets = [0, 128], sizes = [32, 128], strides = [1, 1]} : vector<32x256xf32> to vector<32x128xf32>
    %cst_51 = arith.constant dense<0xFF800000> : vector<32xf32>
    %160 = vector.multi_reduction <maximumf>, %159, %cst_51 [1] : vector<32x128xf32> to vector<32xf32>
    %161 = vector.shape_cast %160 : vector<32xf32> to vector<32x1xf32>
    %162 = tpu.concatenate %158, %161 in 1 : vector<32x1xf32>, vector<32x1xf32> -> vector<32x2xf32>
    %c32_52 = arith.constant 32 : index
    %c64_53 = arith.constant 64 : index
    %163 = vector.load %arg2[%c32_52, %c64_53] : memref<208x128xf32, #tpu.memory_space<vmem>>, vector<32x64xf32>
    %164 = arith.truncf %163 : vector<32x64xf32> to vector<32x64xbf16>
    %165 = arith.addf %91, %162 : vector<32x2xf32>
    %166 = tpu.concatenate %90, %165 in 0 : vector<32x2xf32>, vector<32x2xf32> -> vector<64x2xf32>
    %167 = arith.truncf %166 : vector<64x2xf32> to vector<64x2xbf16>
    %cst_54 = arith.constant dense<0.000000e+00> : vector<32x2xf32>
    %168 = tpu.matmul %164, %167, %cst_54 {dimension_numbers = #tpu.dot_dimension_numbers<[1], [0], [0], [1], [0, 0, 1, 1], [], []>} : vector<32x64xbf16>, vector<64x2xbf16>, vector<32x2xf32> -> vector<32x2xf32>
    %169 = arith.addf %168, %97 : vector<32x2xf32>
    %170 = vector.extract_strided_slice %164 {offsets = [0, 0], sizes = [32, 32], strides = [1, 1]} : vector<32x64xbf16> to vector<32x32xbf16>
    %171 = arith.truncf %155 : vector<32x256xf32> to vector<32x256xbf16>
    %cst_55 = arith.constant dense<0.000000e+00> : vector<32x256xf32>
    %172 = tpu.matmul %170, %171, %cst_55 {dimension_numbers = #tpu.dot_dimension_numbers<[1], [0], [0], [1], [0, 0, 1, 1], [], []>} : vector<32x32xbf16>, vector<32x256xbf16>, vector<32x256xf32> -> vector<32x256xf32>
    %173 = vector.extract_strided_slice %169 {offsets = [0, 0], sizes = [32, 1], strides = [1, 1]} : vector<32x2xf32> to vector<32x1xf32>
    %174 = vector.shape_cast %173 : vector<32x1xf32> to vector<32x1xf32>
    %175 = vector.broadcast %174 : vector<32x1xf32> to vector<32x256xf32>
    %c128_i32_56 = arith.constant 128 : i32
    %176 = vector.broadcast %c128_i32_56 : i32 to vector<32x256xi32>
    %177 = arith.cmpi sge, %0, %176 : vector<32x256xi32>
    %178 = vector.extract_strided_slice %169 {offsets = [0, 1], sizes = [32, 1], strides = [1, 1]} : vector<32x2xf32> to vector<32x1xf32>
    %179 = vector.shape_cast %178 : vector<32x1xf32> to vector<32x1xf32>
    %180 = vector.broadcast %179 : vector<32x1xf32> to vector<32x256xf32>
    %181 = arith.select %177, %180, %175 : vector<32x256xi1>, vector<32x256xf32>
    %182 = arith.addf %172, %181 : vector<32x256xf32>
    %c144_57 = arith.constant 144 : index
    %c11 = arith.constant 11 : index
    %183 = vector.load %arg2[%c144_57, %c11] : memref<208x128xf32, #tpu.memory_space<vmem>>, vector<32x1xf32>
    %184 = vector.broadcast %183 : vector<32x1xf32> to vector<32x256xf32>
    %185 = arith.addf %182, %184 : vector<32x256xf32>
    %cst_58 = arith.constant 0.000000e+00 : f32
    %186 = vector.broadcast %cst_58 : f32 to vector<32x256xf32>
    %187 = arith.maximumf %185, %186 : vector<32x256xf32>
    %c96_59 = arith.constant 96 : index
    %c96_60 = arith.constant 96 : index
    %188 = vector.load %arg2[%c96_59, %c96_60] : memref<208x128xf32, #tpu.memory_space<vmem>>, vector<32x32xf32>
    %189 = arith.truncf %188 : vector<32x32xf32> to vector<32x32xbf16>
    %190 = arith.truncf %187 : vector<32x256xf32> to vector<32x256xbf16>
    %cst_61 = arith.constant dense<0.000000e+00> : vector<32x256xf32>
    %191 = tpu.matmul %189, %190, %cst_61 {dimension_numbers = #tpu.dot_dimension_numbers<[1], [0], [0], [1], [0, 0, 1, 1], [], []>} : vector<32x32xbf16>, vector<32x256xbf16>, vector<32x256xf32> -> vector<32x256xf32>
    %c144_62 = arith.constant 144 : index
    %c12 = arith.constant 12 : index
    %192 = vector.load %arg2[%c144_62, %c12] : memref<208x128xf32, #tpu.memory_space<vmem>>, vector<32x1xf32>
    %193 = vector.broadcast %192 : vector<32x1xf32> to vector<32x256xf32>
    %194 = arith.addf %191, %193 : vector<32x256xf32>
    %cst_63 = arith.constant 0.000000e+00 : f32
    %195 = vector.broadcast %cst_63 : f32 to vector<32x256xf32>
    %196 = arith.maximumf %194, %195 : vector<32x256xf32>
    %c128 = arith.constant 128 : index
    %c0_64 = arith.constant 0 : index
    %197 = vector.load %arg2[%c128, %c0_64] : memref<208x128xf32, #tpu.memory_space<vmem>>, vector<8x32xf32>
    %198 = arith.truncf %197 : vector<8x32xf32> to vector<8x32xbf16>
    %199 = arith.truncf %196 : vector<32x256xf32> to vector<32x256xbf16>
    %cst_65 = arith.constant dense<0.000000e+00> : vector<8x256xf32>
    %200 = tpu.matmul %198, %199, %cst_65 {dimension_numbers = #tpu.dot_dimension_numbers<[1], [0], [0], [1], [0, 0, 1, 1], [], []>} : vector<8x32xbf16>, vector<32x256xbf16>, vector<8x256xf32> -> vector<8x256xf32>
    %c144_66 = arith.constant 144 : index
    %c13 = arith.constant 13 : index
    %201 = vector.load %arg2[%c144_66, %c13] : memref<208x128xf32, #tpu.memory_space<vmem>>, vector<8x1xf32>
    %202 = vector.broadcast %201 : vector<8x1xf32> to vector<8x256xf32>
    %203 = arith.addf %200, %202 : vector<8x256xf32>
    %c0_67 = arith.constant 0 : index
    %c0_68 = arith.constant 0 : index
    %204 = vector.load %arg4[%c0_67, %c0_68] : memref<8x256xf32, #tpu.memory_space<vmem>>, vector<8x256xf32>
    tpu.vector_store %arg4[%c0_67, %c0_68], %203 {strides = array<i32>} : memref<8x256xf32, #tpu.memory_space<vmem>>, vector<8x256xf32>,
    return
  }
}

</mosaic_0001>

<llo_original>
// kernel: guided_point_diffusion_forward.1
$region0: #{guided_point_diffusion_forward.1}
  #allocation0 [shape = 'u32[]', space=smem, size = 0x4, offset = 0x4, fixed_abs, tag = 'smem constant byte address 0x4 - core index']
  #allocation1 [shape = 'u32[144,128]{1,0:T(1,128)}', space=vmem, size = 0x12000, scoped, tag = 'internal scratch']
  %s0 = inlined_call_operand.vmem [shape: f32[8,256], index: 0, kind: input, shape index: {}]
  %s1 = inlined_call_operand.vmem [shape: f32[32,2], index: 1, kind: input, shape index: {}]
  %s2 = inlined_call_operand.vmem [shape: f32[208,128], index: 2, kind: input, shape index: {}]
  %s3 = inlined_call_operand.vmem [shape: f32[2], index: 3, kind: input, shape index: {}]
  %s4 = inlined_call_operand.vmem [shape: f32[8,256], index: 4, kind: output, shape index: {}]
  %s5 = sld [smem:[#allocation0]]
  $region30: #{guided_point_diffusion_forward.1} parent=0
    _
  %s7 = ssub.s32 1, %s5
  %s8 = scalar_select 0, %s7, %s5
  $region1: #{guided_point_diffusion_forward.1} parent=0
    #allocation2 [shape = 'u8[512]{0}', space=smem, size = 0x200, scoped, tag = 'input window, operand 3, single buffered']
    #allocation3 [shape = 's32[1]{0}', space=sflag, size = 0x4, scoped, tag = 'scoped memory for guided_point_diffusion_forward.1']
    %9 = vsyncpa [#allocation3], 0
    // Predicated region
    $region2: #{guided_point_diffusion_forward.1} parent=1 // pred_check
      _
    $region3: #{guided_point_diffusion_forward.1} parent=1 // pred_check_branch
      %11 = sbr.rel (0) target = $region5
    $region4: #{guided_point_diffusion_forward.1} parent=1 // pred_region
      _
    $region5: #{guided_point_diffusion_forward.1} parent=1 // pred_fallthru
      _
    // Predicated region
    $region6: #{guided_point_diffusion_forward.1} parent=1 // pred_check
      _
    $region7: #{guided_point_diffusion_forward.1} parent=1 // pred_check_branch
      %13 = sbr.rel (0) target = $region9
    $region8: #{guided_point_diffusion_forward.1} parent=1 // pred_region
      _
    $region9: #{guided_point_diffusion_forward.1} parent=1 // pred_fallthru
      _
    // Predicated region
    $region10: #{guided_point_diffusion_forward.1} parent=1 // pred_check
      _
    $region11: #{guided_point_diffusion_forward.1} parent=1 // pred_check_branch
      %15 = sbr.rel (0) target = $region13
    $region12: #{guided_point_diffusion_forward.1} parent=1 // pred_region
      _
    $region13: #{guided_point_diffusion_forward.1} parent=1 // pred_fallthru
      _
    // Predicated region
    $region14: #{guided_point_diffusion_forward.1} parent=1 // pred_check
      _
    $region15: #{guided_point_diffusion_forward.1} parent=1 // pred_check_branch
      %17 = sbr.rel (0) target = $region17
    $region16: #{guided_point_diffusion_forward.1} parent=1 // pred_region
      %s19 = ssub.s32 16, 16
      %20 = vsyncadd [#allocation3], %s19
      %s22 = sshll.u32 %s3, 4
      %s23 = int_to_ptr.vmem [resolvable:$true] %s22
      %25 = dma.vmem_to_smem %s23, 16, [#allocation2], [#allocation3]
    $region17: #{guided_point_diffusion_forward.1} parent=1 // pred_fallthru
      _
    // Predicated region
    $region18: #{guided_point_diffusion_forward.1} parent=1 // pred_check
      _
    $region19: #{guided_point_diffusion_forward.1} parent=1 // pred_check_branch
      %27 = sbr.rel (0) target = $region21
    $region20: #{guided_point_diffusion_forward.1} parent=1 // pred_region
      %28 = dma.done [#allocation3], 16
    $region21: #{guided_point_diffusion_forward.1} parent=1 // pred_fallthru
      _
    %29 = sfence
    %v31 = vlaneseq
    %v32 = vand.u32 %v31, 127
    %v33 = vadd.s32 %v32, 128
    %v34 = vld [vmem:[%s0] sm:$0xff]
    %v35 = vld [vmem:[%s0 + $0x8] sm:$0xff]
    %v36 = vld [vmem:[%s1] sm:$0xff]
    %v37 = vld [vmem:[%s1 + $0x8] sm:$0xff]
    %v38 = vld [vmem:[%s1 + $0x10] sm:$0xff]
    %v39 = vld [vmem:[%s1 + $0x18] sm:$0xff]
    %v40 = vld [vmem:[%s2 + $0x90] sm:$0xff]
    %v41 = vld [vmem:[%s2 + $0x98] sm:$0xff]
    %v42 = vld [vmem:[%s2 + $0xa0] sm:$0xff]
    %v43 = vld [vmem:[%s2 + $0xa8] sm:$0xff]
    %v44 = vld [vmem:[%s2 + $0xb0] sm:$0xff]
    %v45 = vld [vmem:[%s2 + $0xb8] sm:$0xff]
    %v46 = vld [vmem:[%s2 + $0xc0] sm:$0xff]
    %v47 = vld [vmem:[%s2 + $0xc8] sm:$0xff]
    %49 = vset.pattern.permute.xlu0 16
    %50 = vperm.xlu0 %49, %v40
    %v51 = vpop.permute.xlu0 %50
    %54 = vset.pattern.permute.xlu0 16
    %55 = vperm.xlu0 %54, %v41
    %v56 = vpop.permute.xlu0 %55
    %59 = vset.pattern.permute.xlu0 16
    %60 = vperm.xlu0 %59, %v42
    %v61 = vpop.permute.xlu0 %60
    %64 = vset.pattern.permute.xlu0 16
    %65 = vperm.xlu0 %64, %v43
    %v66 = vpop.permute.xlu0 %65
    %69 = vset.pattern.permute.xlu0 16
    %70 = vperm.xlu0 %69, %v44
    %v71 = vpop.permute.xlu0 %70
    %74 = vset.pattern.permute.xlu0 16
    %75 = vperm.xlu0 %74, %v45
    %v76 = vpop.permute.xlu0 %75
    %79 = vset.pattern.permute.xlu0 16
    %80 = vperm.xlu0 %79, %v46
    %v81 = vpop.permute.xlu0 %80
    %84 = vset.pattern.permute.xlu0 16
    %85 = vperm.xlu0 %84, %v47
    %v86 = vpop.permute.xlu0 %85
    %v88 = vlaneseq
    %v89 = vshrl.u32 %v88, 7
    %v90 = vsub.s32 3, %v89
    %v91 = vrot.slane %v34, %v90
    %v92 = vlaneseq
    %v93 = vshrl.u32 %v92, 7
    %v94 = vsub.s32 3, %v93
    %v95 = vrot.slane %v35, %v94
    %v96 = vmul.f32 %v51, %v91
    %v97 = vmul.f32 %v51, %v95
    %v98 = vmul.f32 %v56, %v91
    %v99 = vmul.f32 %v56, %v95
    %v100 = vmul.f32 %v61, %v91
    %v101 = vmul.f32 %v61, %v95
    %v102 = vmul.f32 %v66, %v91
    %v103 = vmul.f32 %v66, %v95
    %v104 = vmul.f32 %v71, %v91
    %v105 = vmul.f32 %v71, %v95
    %v106 = vmul.f32 %v76, %v91
    %v107 = vmul.f32 %v76, %v95
    %v108 = vmul.f32 %v81, %v91
    %v109 = vmul.f32 %v81, %v95
    %v110 = vmul.f32 %v86, %v91
    %v111 = vmul.f32 %v86, %v95
    %112 = vset.pattern.permute.xlu0 17
    %113 = vperm.xlu0 %112, %v40
    %v114 = vpop.permute.xlu0 %113
    %116 = vset.pattern.permute.xlu0 17
    %117 = vperm.xlu0 %116, %v41
    %v118 = vpop.permute.xlu0 %117
    %120 = vset.pattern.permute.xlu0 17
    %121 = vperm.xlu0 %120, %v42
    %v122 = vpop.permute.xlu0 %121
    %124 = vset.pattern.permute.xlu0 17
    %125 = vperm.xlu0 %124, %v43
    %v126 = vpop.permute.xlu0 %125
    %128 = vset.pattern.permute.xlu0 17
    %129 = vperm.xlu0 %128, %v44
    %v130 = vpop.permute.xlu0 %129
    %132 = vset.pattern.permute.xlu0 17
    %133 = vperm.xlu0 %132, %v45
    %v134 = vpop.permute.xlu0 %133
    %136 = vset.pattern.permute.xlu0 17
    %137 = vperm.xlu0 %136, %v46
    %v138 = vpop.permute.xlu0 %137
    %140 = vset.pattern.permute.xlu0 17
    %141 = vperm.xlu0 %140, %v47
    %v142 = vpop.permute.xlu0 %141
    %v144 = vlaneseq
    %v145 = vshrl.u32 %v144, 7
    %v146 = vsub.s32 4, %v145
    %v147 = vrot.slane %v34, %v146
    %v148 = vlaneseq
    %v149 = vshrl.u32 %v148, 7
    %v150 = vsub.s32 4, %v149
    %v151 = vrot.slane %v35, %v150
    %v152 = vmul.f32 %v114, %v147
    %v153 = vmul.f32 %v114, %v151
    %v154 = vmul.f32 %v118, %v147
    %v155 = vmul.f32 %v118, %v151
    %v156 = vmul.f32 %v122, %v147
    %v157 = vmul.f32 %v122, %v151
    %v158 = vmul.f32 %v126, %v147
    %v159 = vmul.f32 %v126, %v151
    %v160 = vmul.f32 %v130, %v147
    %v161 = vmul.f32 %v130, %v151
    %v162 = vmul.f32 %v134, %v147
    %v163 = vmul.f32 %v134, %v151
    %v164 = vmul.f32 %v138, %v147
    %v165 = vmul.f32 %v138, %v151
    %v166 = vmul.f32 %v142, %v147
    %v167 = vmul.f32 %v142, %v151
    %v168 = vadd.f32 %v96, %v152
    %v169 = vadd.f32 %v97, %v153
    %v170 = vadd.f32 %v98, %v154
    %v171 = vadd.f32 %v99, %v155
    %v172 = vadd.f32 %v100, %v156
    %v173 = vadd.f32 %v101, %v157
    %v174 = vadd.f32 %v102, %v158
    %v175 = vadd.f32 %v103, %v159
    %v176 = vadd.f32 %v104, %v160
    %v177 = vadd.f32 %v105, %v161
    %v178 = vadd.f32 %v106, %v162
    %v179 = vadd.f32 %v107, %v163
    %v180 = vadd.f32 %v108, %v164
    %v181 = vadd.f32 %v109, %v165
    %v182 = vadd.f32 %v110, %v166
    %v183 = vadd.f32 %v111, %v167
    %184 = vset.pattern.permute.xlu0 18
    %185 = vperm.xlu0 %184, %v40
    %v186 = vpop.permute.xlu0 %185
    %188 = vset.pattern.permute.xlu0 18
    %189 = vperm.xlu0 %188, %v41
    %v190 = vpop.permute.xlu0 %189
    %192 = vset.pattern.permute.xlu0 18
    %193 = vperm.xlu0 %192, %v42
    %v194 = vpop.permute.xlu0 %193
    %196 = vset.pattern.permute.xlu0 18
    %197 = vperm.xlu0 %196, %v43
    %v198 = vpop.permute.xlu0 %197
    %200 = vset.pattern.permute.xlu0 18
    %201 = vperm.xlu0 %200, %v44
    %v202 = vpop.permute.xlu0 %201
    %204 = vset.pattern.permute.xlu0 18
    %205 = vperm.xlu0 %204, %v45
    %v206 = vpop.permute.xlu0 %205
    %208 = vset.pattern.permute.xlu0 18
    %209 = vperm.xlu0 %208, %v46
    %v210 = vpop.permute.xlu0 %209
    %212 = vset.pattern.permute.xlu0 18
    %213 = vperm.xlu0 %212, %v47
    %v214 = vpop.permute.xlu0 %213
    %v216 = vlaneseq
    %v217 = vshrl.u32 %v216, 7
    %v218 = vsub.s32 5, %v217
    %v219 = vrot.slane %v34, %v218
    %v220 = vlaneseq
    %v221 = vshrl.u32 %v220, 7
    %v222 = vsub.s32 5, %v221
    %v223 = vrot.slane %v35, %v222
    %v224 = vmul.f32 %v186, %v219
    %v225 = vmul.f32 %v186, %v223
    %v226 = vmul.f32 %v190, %v219
    %v227 = vmul.f32 %v190, %v223
    %v228 = vmul.f32 %v194, %v219
    %v229 = vmul.f32 %v194, %v223
    %v230 = vmul.f32 %v198, %v219
    %v231 = vmul.f32 %v198, %v223
    %v232 = vmul.f32 %v202, %v219
    %v233 = vmul.f32 %v202, %v223
    %v234 = vmul.f32 %v206, %v219
    %v235 = vmul.f32 %v206, %v223
    %v236 = vmul.f32 %v210, %v219
    %v237 = vmul.f32 %v210, %v223
    %v238 = vmul.f32 %v214, %v219
    %v239 = vmul.f32 %v214, %v223
    %v240 = vadd.f32 %v168, %v224
    %v241 = vadd.f32 %v169, %v225
    %v242 = vadd.f32 %v170, %v226
    %v243 = vadd.f32 %v171, %v227
    %v244 = vadd.f32 %v172, %v228
    %v245 = vadd.f32 %v173, %v229
    %v246 = vadd.f32 %v174, %v230
    %v247 = vadd.f32 %v175, %v231
    %v248 = vadd.f32 %v176, %v232
    %v249 = vadd.f32 %v177, %v233
    %v250 = vadd.f32 %v178, %v234
    %v251 = vadd.f32 %v179, %v235
    %v252 = vadd.f32 %v180, %v236
    %v253 = vadd.f32 %v181, %v237
    %v254 = vadd.f32 %v182, %v238
    %v255 = vadd.f32 %v183, %v239
    %256 = vset.pattern.permute.xlu0 0
    %257 = vperm.xlu0 %256, %v40
    %v258 = vpop.permute.xlu0 %257
    %260 = vset.pattern.permute.xlu0 0
    %261 = vperm.xlu0 %260, %v41
    %v262 = vpop.permute.xlu0 %261
    %264 = vset.pattern.permute.xlu0 0
    %265 = vperm.xlu0 %264, %v42
    %v266 = vpop.permute.xlu0 %265
    %268 = vset.pattern.permute.xlu0 0
    %269 = vperm.xlu0 %268, %v43
    %v270 = vpop.permute.xlu0 %269
    %272 = vset.pattern.permute.xlu0 0
    %273 = vperm.xlu0 %272, %v44
    %v274 = vpop.permute.xlu0 %273
    %276 = vset.pattern.permute.xlu0 0
    %277 = vperm.xlu0 %276, %v45
    %v278 = vpop.permute.xlu0 %277
    %280 = vset.pattern.permute.xlu0 0
    %281 = vperm.xlu0 %280, %v46
    %v282 = vpop.permute.xlu0 %281
    %284 = vset.pattern.permute.xlu0 0
    %285 = vperm.xlu0 %284, %v47
    %v286 = vpop.permute.xlu0 %285
    %v288 = vadd.f32 %v240, %v258
    %v289 = vadd.f32 %v241, %v258
    %v290 = vadd.f32 %v242, %v262
    %v291 = vadd.f32 %v243, %v262
    %v292 = vadd.f32 %v244, %v266
    %v293 = vadd.f32 %v245, %v266
    %v294 = vadd.f32 %v246, %v270
    %v295 = vadd.f32 %v247, %v270
    %v296 = vadd.f32 %v248, %v274
    %v297 = vadd.f32 %v249, %v274
    %v298 = vadd.f32 %v250, %v278
    %v299 = vadd.f32 %v251, %v278
    %v300 = vadd.f32 %v252, %v282
    %v301 = vadd.f32 %v253, %v282
    %v302 = vadd.f32 %v254, %v286
    %v303 = vadd.f32 %v255, %v286
    %v304 = vmax.f32 %v288, 0.0
    %v305 = vmax.f32 %v289, 0.0
    %v306 = vmax.f32 %v290, 0.0
    %v307 = vmax.f32 %v291, 0.0
    %v308 = vmax.f32 %v292, 0.0
    %v309 = vmax.f32 %v293, 0.0
    %v310 = vmax.f32 %v294, 0.0
    %v311 = vmax.f32 %v295, 0.0
    %v312 = vmax.f32 %v296, 0.0
    %v313 = vmax.f32 %v297, 0.0
    %v314 = vmax.f32 %v298, 0.0
    %v315 = vmax.f32 %v299, 0.0
    %v316 = vmax.f32 %v300, 0.0
    %v317 = vmax.f32 %v301, 0.0
    %v318 = vmax.f32 %v302, 0.0
    %v319 = vmax.f32 %v303, 0.0
    %v320 = vld [vmem:[%s2] sm:$0xff]
    %v321 = vld [vmem:[%s2 + $0x8] sm:$0xff]
    %v322 = vld [vmem:[%s2 + $0x10] sm:$0xff]
    %v323 = vld [vmem:[%s2 + $0x18] sm:$0xff]
    %v324 = vld [vmem:[%s2 + $0x20] sm:$0xff]
    %v325 = vld [vmem:[%s2 + $0x28] sm:$0xff]
    %v326 = vld [vmem:[%s2 + $0x30] sm:$0xff]
    %v327 = vld [vmem:[%s2 + $0x38] sm:$0xff]
    %v328 = vpack.c.bf16 %v321, %v320
    %v329 = vpack.c.bf16 %v323, %v322
    %v330 = vpack.c.bf16 %v325, %v324
    %v331 = vpack.c.bf16 %v327, %v326
    %v332 = vpack.c.bf16 %v306, %v304
    %v333 = vpack.c.bf16 %v307, %v305
    %v334 = vpack.c.bf16 %v310, %v308
    %v335 = vpack.c.bf16 %v311, %v309
    %v336 = vpack.c.bf16 %v314, %v312
    %v337 = vpack.c.bf16 %v315, %v313
    %v338 = vpack.c.bf16 %v318, %v316
    %v339 = vpack.c.bf16 %v319, %v317
    %340 = vset.pattern.permute.xlu0 1
    %341 = vperm.xlu0 %340, %v40
    %v342 = vpop.permute.xlu0 %341
    %344 = vset.pattern.permute.xlu0 1
    %345 = vperm.xlu0 %344, %v41
    %v346 = vpop.permute.xlu0 %345
    %348 = vset.pattern.permute.xlu0 1
    %349 = vperm.xlu0 %348, %v42
    %v350 = vpop.permute.xlu0 %349
    %352 = vset.pattern.permute.xlu0 1
    %353 = vperm.xlu0 %352, %v43
    %v354 = vpop.permute.xlu0 %353
    %356 = vset.pattern.permute.xlu0 1
    %357 = vperm.xlu0 %356, %v44
    %v358 = vpop.permute.xlu0 %357
    %360 = vset.pattern.permute.xlu0 1
    %361 = vperm.xlu0 %360, %v45
    %v362 = vpop.permute.xlu0 %361
    %364 = vset.pattern.permute.xlu0 1
    %365 = vperm.xlu0 %364, %v46
    %v366 = vpop.permute.xlu0 %365
    %368 = vset.pattern.permute.xlu0 1
    %369 = vperm.xlu0 %368, %v47
    %v370 = vpop.permute.xlu0 %369
    %vm372 = vcmask 523264
    %v374 = vsel %vm372, %v328, 0
    %v377 = vsel %vm372, %v329, 0
    %v380 = vsel %vm372, %v330, 0
    %v383 = vsel %vm372, %v331, 0
    %385 = vmatprep.subr.bf16.mxu0 %v333
    %386 = vmatpush1.bf16.msra.mxu0 %v332
    %387 = vmatprep.subr.bf16.mxu0 %v335
    %388 = vmatpush1.bf16.msra.mxu0 %v334
    %389 = vmatprep.subr.bf16.mxu0 %v337
    %390 = vmatpush1.bf16.msra.mxu0 %v336
    %391 = vmatprep.subr.bf16.mxu0 %v339
    %392 = vmatpush1.bf16.msra.mxu0 %v338
    %393 = vmatprep.subr.bf16.mxu0 0
    %394 = vmatpush1.bf16.msra.mxu0 0
    %395 = vmatprep.subr.bf16.mxu0 0
    %396 = vmatpush1.bf16.msra.mxu0 0
    %397 = vmatprep.subr.bf16.mxu0 0
    %398 = vmatpush1.bf16.msra.mxu0 0
    %399 = vmatprep.subr.bf16.mxu0 0
    %400 = vmatpush1.bf16.msra.mxu0 0
    %401 = vmatprep.subr.bf16.mxu0 0
    %402 = vmatpush1.bf16.msra.mxu0 0
    %403 = vmatprep.subr.bf16.mxu0 0
    %404 = vmatpush1.bf16.msra.mxu0 0
    %405 = vmatprep.subr.bf16.mxu0 0
    %406 = vmatpush1.bf16.msra.mxu0 0
    %407 = vmatprep.subr.bf16.mxu0 0
    %408 = vmatpush1.bf16.msra.mxu0 0
    %409 = vmatprep.subr.bf16.mxu0 0
    %410 = vmatpush1.bf16.msra.mxu0 0
    %411 = vmatprep.subr.bf16.mxu0 0
    %412 = vmatpush1.bf16.msra.mxu0 0
    %413 = vmatprep.subr.bf16.mxu0 0
    %414 = vmatpush1.bf16.msra.mxu0 0
    %415 = vmatprep.subr.bf16.mxu0 0
    %416 = vmatpush1.bf16.msra.mxu0 0
    %417 = vmatprep.mubr.bf16.mxu0 0
    %418 = vmatmul.mubr.bf16.gmra.mrb[0].mxu0 %v374
    %v419 = vpop.f32.mrb[0].mxu0
    %v420 = vadd.f32 %v342, %v419
    %v421 = vpop.f32.mrb[0].mxu0
    %v422 = vadd.f32 %v342, %v421
    %v423 = vpop.f32.mrb[0].mxu0
    %v424 = vadd.f32 %v346, %v423
    %v425 = vpop.f32.mrb[0].mxu0
    %v426 = vadd.f32 %v346, %v425
    %427 = vmatprep.mubr.bf16.mxu0 0
    %428 = vmatmul.mubr.bf16.gmra.mrb[0].mxu0 %v377
    %v429 = vpop.f32.mrb[0].mxu0
    %v430 = vadd.f32 %v350, %v429
    %v431 = vpop.f32.mrb[0].mxu0
    %v432 = vadd.f32 %v350, %v431
    %v433 = vpop.f32.mrb[0].mxu0
    %v434 = vadd.f32 %v354, %v433
    %v435 = vpop.f32.mrb[0].mxu0
    %v436 = vadd.f32 %v354, %v435
    %437 = vmatprep.mubr.bf16.mxu0 0
    %438 = vmatmul.mubr.bf16.gmra.mrb[0].mxu0 %v380
    %v439 = vpop.f32.mrb[0].mxu0
    %v440 = vadd.f32 %v358, %v439
    %v441 = vpop.f32.mrb[0].mxu0
    %v442 = vadd.f32 %v358, %v441
    %v443 = vpop.f32.mrb[0].mxu0
    %v444 = vadd.f32 %v362, %v443
    %v445 = vpop.f32.mrb[0].mxu0
    %v446 = vadd.f32 %v362, %v445
    %447 = vmatprep.mubr.bf16.mxu0 0
    %448 = vmatmul.mubr.bf16.gmra.mrb[0].mxu0 %v383
    %v449 = vpop.f32.mrb[0].mxu0
    %v450 = vadd.f32 %v366, %v449
    %v451 = vpop.f32.mrb[0].mxu0
    %v452 = vadd.f32 %v366, %v451
    %v453 = vpop.f32.mrb[0].mxu0
    %v454 = vadd.f32 %v370, %v453
    %v455 = vpop.f32.mrb[0].mxu0
    %v456 = vadd.f32 %v370, %v455
    %457 = vdwg.mxu0
    %v458 = vmax.f32 %v420, 0.0
    %v459 = vmax.f32 %v422, 0.0
    %v460 = vmax.f32 %v424, 0.0
    %v461 = vmax.f32 %v426, 0.0
    %v462 = vmax.f32 %v430, 0.0
    %v463 = vmax.f32 %v432, 0.0
    %v464 = vmax.f32 %v434, 0.0
    %v465 = vmax.f32 %v436, 0.0
    %v466 = vmax.f32 %v440, 0.0
    %v467 = vmax.f32 %v442, 0.0
    %v468 = vmax.f32 %v444, 0.0
    %v469 = vmax.f32 %v446, 0.0
    %v470 = vmax.f32 %v450, 0.0
    %v471 = vmax.f32 %v452, 0.0
    %v472 = vmax.f32 %v454, 0.0
    %v473 = vmax.f32 %v456, 0.0
    %474 = vmax.xlane.f32.xlu0 %v458
    %v475 = vpop.xlane.xlu0 %474
    %476 = vmax.xlane.f32.xlu0 %v460
    %v477 = vpop.xlane.xlu0 %476
    %478 = vmax.xlane.f32.xlu0 %v462
    %v479 = vpop.xlane.xlu0 %478
    %480 = vmax.xlane.f32.xlu0 %v464
    %v481 = vpop.xlane.xlu0 %480
    %482 = vmax.xlane.f32.xlu0 %v466
    %v483 = vpop.xlane.xlu0 %482
    %484 = vmax.xlane.f32.xlu0 %v468
    %v485 = vpop.xlane.xlu0 %484
    %486 = vmax.xlane.f32.xlu0 %v470
    %v487 = vpop.xlane.xlu0 %486
    %488 = vmax.xlane.f32.xlu0 %v472
    %v489 = vpop.xlane.xlu0 %488
    %490 = vmax.xlane.f32.xlu0 %v459
    %v491 = vpop.xlane.xlu0 %490
    %492 = vmax.xlane.f32.xlu0 %v461
    %v493 = vpop.xlane.xlu0 %492
    %494 = vmax.xlane.f32.xlu0 %v463
    %v495 = vpop.xlane.xlu0 %494
    %496 = vmax.xlane.f32.xlu0 %v465
    %v497 = vpop.xlane.xlu0 %496
    %498 = vmax.xlane.f32.xlu0 %v467
    %v499 = vpop.xlane.xlu0 %498
    %500 = vmax.xlane.f32.xlu0 %v469
    %v501 = vpop.xlane.xlu0 %500
    %502 = vmax.xlane.f32.xlu0 %v471
    %v503 = vpop.xlane.xlu0 %502
    %504 = vmax.xlane.f32.xlu0 %v473
    %v505 = vpop.xlane.xlu0 %504
    %vm506 = vcmask 7168
    %v507 = vsel %vm506, %v475, %v491
    %v508 = vsel %vm506, %v477, %v493
    %v509 = vsel %vm506, %v479, %v495
    %v510 = vsel %vm506, %v481, %v497
    %v511 = vsel %vm506, %v483, %v499
    %v512 = vsel %vm506, %v485, %v501
    %v513 = vsel %vm506, %v487, %v503
    %v514 = vsel %vm506, %v489, %v505
    %s515 = sld [smem:[#allocation2]]
    %s516 = smul.f32 %s515, 0.01
    %v517 = vstv %s516
    %vm518 = vcmp.ge.s32.totalorder %v32, 1
    %s519 = sld [smem:[#allocation2 + $0x1]]
    %s520 = smul.f32 %s519, 0.01
    %v521 = vstv %s520
    %v522 = vsel %vm518, %v521, %v517
    %v523 = vld [vmem:[%s2 + $0x90] sm:$0xff]
    %v524 = vld [vmem:[%s2 + $0x98] sm:$0xff]
    %v525 = vld [vmem:[%s2 + $0xa0] sm:$0xff]
    %v526 = vld [vmem:[%s2 + $0xa8] sm:$0xff]
    %528 = vset.pattern.permute.xlu0 3
    %529 = vperm.xlu0 %528, %v523
    %v530 = vpop.permute.xlu0 %529
    %533 = vset.pattern.permute.xlu0 3
    %534 = vperm.xlu0 %533, %v524
    %v535 = vpop.permute.xlu0 %534
    %538 = vset.pattern.permute.xlu0 3
    %539 = vperm.xlu0 %538, %v525
    %v540 = vpop.permute.xlu0 %539
    %543 = vset.pattern.permute.xlu0 3
    %544 = vperm.xlu0 %543, %v526
    %v545 = vpop.permute.xlu0 %544
    %v547 = vmul.f32 %v530, %v522
    %v548 = vmul.f32 %v535, %v522
    %v549 = vmul.f32 %v540, %v522
    %v550 = vmul.f32 %v545, %v522
    %v551 = vld [vmem:[%s2] sm:$0xff]
    %v552 = vld [vmem:[%s2 + $0x8] sm:$0xff]
    %v553 = vld [vmem:[%s2 + $0x10] sm:$0xff]
    %v554 = vld [vmem:[%s2 + $0x18] sm:$0xff]
    %v555 = vpack.c.bf16 %v552, %v551
    %v556 = vpack.c.bf16 %v554, %v553
    %v557 = vpack.c.bf16 %v508, %v507
    %v558 = vpack.c.bf16 %v510, %v509
    %v559 = vpack.c.bf16 %v512, %v511
    %v560 = vpack.c.bf16 %v514, %v513
    %563 = vrot.lane.b32.xlu0 %v555, 64
    %v564 = vpop.permute.xlu0 %563
    %565 = vrot.lane.b32.xlu0 %v556, 64
    %v566 = vpop.permute.xlu0 %565
    %v568 = vsel %vm372, %v564, 0
    %v571 = vsel %vm372, %v566, 0
    %573 = vmatprep.subr.bf16.mxu0 0
    %574 = vmatpush1.bf16.msra.mxu0 %v557
    %575 = vmatprep.subr.bf16.mxu0 0
    %576 = vmatpush1.bf16.msra.mxu0 %v558
    %577 = vmatprep.subr.bf16.mxu0 0
    %578 = vmatpush1.bf16.msra.mxu0 %v559
    %579 = vmatprep.subr.bf16.mxu0 0
    %580 = vmatpush1.bf16.msra.mxu0 %v560
    %581 = vmatprep.subr.bf16.mxu0 0
    %582 = vmatpush1.bf16.msra.mxu0 0
    %583 = vmatprep.subr.bf16.mxu0 0
    %584 = vmatpush1.bf16.msra.mxu0 0
    %585 = vmatprep.subr.bf16.mxu0 0
    %586 = vmatpush1.bf16.msra.mxu0 0
    %587 = vmatprep.subr.bf16.mxu0 0
    %588 = vmatpush1.bf16.msra.mxu0 0
    %589 = vmatprep.subr.bf16.mxu0 0
    %590 = vmatpush1.bf16.msra.mxu0 0
    %591 = vmatprep.subr.bf16.mxu0 0
    %592 = vmatpush1.bf16.msra.mxu0 0
    %593 = vmatprep.subr.bf16.mxu0 0
    %594 = vmatpush1.bf16.msra.mxu0 0
    %595 = vmatprep.subr.bf16.mxu0 0
    %596 = vmatpush1.bf16.msra.mxu0 0
    %597 = vmatprep.subr.bf16.mxu0 0
    %598 = vmatpush1.bf16.msra.mxu0 0
    %599 = vmatprep.subr.bf16.mxu0 0
    %600 = vmatpush1.bf16.msra.mxu0 0
    %601 = vmatprep.subr.bf16.mxu0 0
    %602 = vmatpush1.bf16.msra.mxu0 0
    %603 = vmatprep.subr.bf16.mxu0 0
    %604 = vmatpush1.bf16.msra.mxu0 0
    %605 = vmatprep.mubr.bf16.mxu0 0
    %606 = vmatmul.mubr.bf16.gmra.mrb[0].mxu0 %v568
    %v607 = vpop.f32.mrb[0].mxu0
    %v608 = vadd.f32 %v547, %v607
    %v609 = vpop.f32.mrb[0].mxu0
    %v610 = vpop.f32.mrb[0].mxu0
    %v611 = vadd.f32 %v548, %v610
    %v612 = vpop.f32.mrb[0].mxu0
    %613 = vmatprep.mubr.bf16.mxu0 0
    %614 = vmatmul.mubr.bf16.gmra.mrb[0].mxu0 %v571
    %v615 = vpop.f32.mrb[0].mxu0
    %v616 = vadd.f32 %v549, %v615
    %v617 = vpop.f32.mrb[0].mxu0
    %v618 = vpop.f32.mrb[0].mxu0
    %v619 = vadd.f32 %v550, %v618
    %v620 = vpop.f32.mrb[0].mxu0
    %621 = vdwg.mxu0
    %622 = vset.pattern.permute.xlu0 4
    %623 = vperm.xlu0 %622, %v523
    %v624 = vpop.permute.xlu0 %623
    %626 = vset.pattern.permute.xlu0 4
    %627 = vperm.xlu0 %626, %v524
    %v628 = vpop.permute.xlu0 %627
    %630 = vset.pattern.permute.xlu0 4
    %631 = vperm.xlu0 %630, %v525
    %v632 = vpop.permute.xlu0 %631
    %634 = vset.pattern.permute.xlu0 4
    %635 = vperm.xlu0 %634, %v526
    %v636 = vpop.permute.xlu0 %635
    %v638 = vadd.f32 %v608, %v624
    %v639 = vadd.f32 %v611, %v628
    %v640 = vadd.f32 %v616, %v632
    %v641 = vadd.f32 %v619, %v636
    %v642 = vmax.f32 %v638, 0.0
    %v643 = vmax.f32 %v639, 0.0
    %v644 = vmax.f32 %v640, 0.0
    %v645 = vmax.f32 %v641, 0.0
    %v646 = vld [vmem:[%s2 + $0x90] sm:$0xff]
    %v647 = vld [vmem:[%s2 + $0x98] sm:$0xff]
    %v648 = vpack.c.bf16 %v647, %v646
    %v649 = vpack.c.bf16 %v643, %v642
    %v650 = vpack.c.bf16 %v645, %v644
    %652 = vset.pattern.permute.xlu0 5
    %653 = vperm.xlu0 %652, %v646
    %v654 = vpop.permute.xlu0 %653
    %657 = vset.pattern.permute.xlu0 5
    %658 = vperm.xlu0 %657, %v647
    %v659 = vpop.permute.xlu0 %658
    %662 = vrot.lane.b32.xlu0 %v648, 88
    %v663 = vpop.permute.xlu0 %662
    %vm664 = vcmask 261120
    %v666 = vsel %vm664, %v663, 0
    %668 = vmatprep.subr.bf16.mxu0 0
    %669 = vmatpush1.bf16.msra.mxu0 %v649
    %670 = vmatprep.subr.bf16.mxu0 0
    %671 = vmatpush1.bf16.msra.mxu0 %v650
    %672 = vmatprep.subr.bf16.mxu0 0
    %673 = vmatpush1.bf16.msra.mxu0 0
    %674 = vmatprep.subr.bf16.mxu0 0
    %675 = vmatpush1.bf16.msra.mxu0 0
    %676 = vmatprep.subr.bf16.mxu0 0
    %677 = vmatpush1.bf16.msra.mxu0 0
    %678 = vmatprep.subr.bf16.mxu0 0
    %679 = vmatpush1.bf16.msra.mxu0 0
    %680 = vmatprep.subr.bf16.mxu0 0
    %681 = vmatpush1.bf16.msra.mxu0 0
    %682 = vmatprep.subr.bf16.mxu0 0
    %683 = vmatpush1.bf16.msra.mxu0 0
    %684 = vmatprep.subr.bf16.mxu0 0
    %685 = vmatpush1.bf16.msra.mxu0 0
    %686 = vmatprep.subr.bf16.mxu0 0
    %687 = vmatpush1.bf16.msra.mxu0 0
    %688 = vmatprep.subr.bf16.mxu0 0
    %689 = vmatpush1.bf16.msra.mxu0 0
    %690 = vmatprep.subr.bf16.mxu0 0
    %691 = vmatpush1.bf16.msra.mxu0 0
    %692 = vmatprep.subr.bf16.mxu0 0
    %693 = vmatpush1.bf16.msra.mxu0 0
    %694 = vmatprep.subr.bf16.mxu0 0
    %695 = vmatpush1.bf16.msra.mxu0 0
    %696 = vmatprep.subr.bf16.mxu0 0
    %697 = vmatpush1.bf16.msra.mxu0 0
    %698 = vmatprep.subr.bf16.mxu0 0
    %699 = vmatpush1.bf16.msra.mxu0 0
    %700 = vmatprep.mubr.bf16.mxu0 0
    %701 = vmatmul.mubr.bf16.gmra.mrb[0].mxu0 %v666
    %v702 = vpop.f32.mrb[0].mxu0
    %v703 = vadd.f32 %v654, %v702
    %v704 = vpop.f32.mrb[0].mxu0
    %v705 = vpop.f32.mrb[0].mxu0
    %v706 = vadd.f32 %v659, %v705
    %v707 = vpop.f32.mrb[0].mxu0
    %708 = vdwg.mxu0
    %v709 = vpack.c.bf16 %v524, %v523
    %v710 = vpack.c.bf16 %v526, %v525
    %v711 = vpack.c.bf16 %v706, %v703
    %712 = vset.pattern.permute.xlu0 10
    %713 = vperm.xlu0 %712, %v523
    %v714 = vpop.permute.xlu0 %713
    %716 = vset.pattern.permute.xlu0 10
    %717 = vperm.xlu0 %716, %v524
    %v718 = vpop.permute.xlu0 %717
    %720 = vset.pattern.permute.xlu0 10
    %721 = vperm.xlu0 %720, %v525
    %v722 = vpop.permute.xlu0 %721
    %724 = vset.pattern.permute.xlu0 10
    %725 = vperm.xlu0 %724, %v526
    %v726 = vpop.permute.xlu0 %725
    %730 = vrot.lane.b32.xlu0 %v709, 104
    %v731 = vpop.permute.xlu0 %730
    %732 = vrot.lane.b32.xlu0 %v710, 104
    %v733 = vpop.permute.xlu0 %732
    %vm734 = vcmask 130048
    %v736 = vsel %vm734, %v731, 0
    %v739 = vsel %vm734, %v733, 0
    %741 = vmatprep.subr.bf16.mxu0 0
    %742 = vmatpush1.bf16.msra.mxu0 %v711
    %743 = vmatprep.subr.bf16.mxu0 0
    %744 = vmatpush1.bf16.msra.mxu0 0
    %745 = vmatprep.subr.bf16.mxu0 0
    %746 = vmatpush1.bf16.msra.mxu0 0
    %747 = vmatprep.subr.bf16.mxu0 0
    %748 = vmatpush1.bf16.msra.mxu0 0
    %749 = vmatprep.subr.bf16.mxu0 0
    %750 = vmatpush1.bf16.msra.mxu0 0
    %751 = vmatprep.subr.bf16.mxu0 0
    %752 = vmatpush1.bf16.msra.mxu0 0
    %753 = vmatprep.subr.bf16.mxu0 0
    %754 = vmatpush1.bf16.msra.mxu0 0
    %755 = vmatprep.subr.bf16.mxu0 0
    %756 = vmatpush1.bf16.msra.mxu0 0
    %757 = vmatprep.subr.bf16.mxu0 0
    %758 = vmatpush1.bf16.msra.mxu0 0
    %759 = vmatprep.subr.bf16.mxu0 0
    %760 = vmatpush1.bf16.msra.mxu0 0
    %761 = vmatprep.subr.bf16.mxu0 0
    %762 = vmatpush1.bf16.msra.mxu0 0
    %763 = vmatprep.subr.bf16.mxu0 0
    %764 = vmatpush1.bf16.msra.mxu0 0
    %765 = vmatprep.subr.bf16.mxu0 0
    %766 = vmatpush1.bf16.msra.mxu0 0
    %767 = vmatprep.subr.bf16.mxu0 0
    %768 = vmatpush1.bf16.msra.mxu0 0
    %769 = vmatprep.subr.bf16.mxu0 0
    %770 = vmatpush1.bf16.msra.mxu0 0
    %771 = vmatprep.subr.bf16.mxu0 0
    %772 = vmatpush1.bf16.msra.mxu0 0
    %773 = vmatprep.mubr.bf16.mxu0 0
    %774 = vmatmul.mubr.bf16.gmra.mrb[0].mxu0 %v736
    %v775 = vpop.f32.mrb[0].mxu0
    %v776 = vadd.f32 %v714, %v775
    %v777 = vpop.f32.mrb[0].mxu0
    %v778 = vpop.f32.mrb[0].mxu0
    %v779 = vadd.f32 %v718, %v778
    %v780 = vpop.f32.mrb[0].mxu0
    %781 = vmatprep.mubr.bf16.mxu0 0
    %782 = vmatmul.mubr.bf16.gmra.mrb[0].mxu0 %v739
    %v783 = vpop.f32.mrb[0].mxu0
    %v784 = vadd.f32 %v722, %v783
    %v785 = vpop.f32.mrb[0].mxu0
    %v786 = vpop.f32.mrb[0].mxu0
    %v787 = vadd.f32 %v726, %v786
    %v788 = vpop.f32.mrb[0].mxu0
    %789 = vdwg.mxu0
    %v790 = vmax.f32 %v776, 0.0
    %v791 = vmax.f32 %v779, 0.0
    %v792 = vmax.f32 %v784, 0.0
    %v793 = vmax.f32 %v787, 0.0
    %v794 = vld [vmem:[%s2 + $0x40] sm:$0xff]
    %v795 = vld [vmem:[%s2 + $0x48] sm:$0xff]
    %v796 = vld [vmem:[%s2 + $0x50] sm:$0xff]
    %v797 = vld [vmem:[%s2 + $0x58] sm:$0xff]
    %v798 = vld [vmem:[%s2 + $0x60] sm:$0xff]
    %v799 = vld [vmem:[%s2 + $0x68] sm:$0xff]
    %v800 = vld [vmem:[%s2 + $0x70] sm:$0xff]
    %v801 = vld [vmem:[%s2 + $0x78] sm:$0xff]
    %v802 = vpack.c.bf16 %v795, %v794
    %v803 = vpack.c.bf16 %v797, %v796
    %v804 = vpack.c.bf16 %v799, %v798
    %v805 = vpack.c.bf16 %v801, %v800
    %v806 = vpack.c.bf16 %v791, %v790
    %v807 = vpack.c.bf16 %v793, %v792
    %808 = vset.pattern.permute.xlu0 2
    %809 = vperm.xlu0 %808, %v40
    %v810 = vpop.permute.xlu0 %809
    %812 = vset.pattern.permute.xlu0 2
    %813 = vperm.xlu0 %812, %v41
    %v814 = vpop.permute.xlu0 %813
    %816 = vset.pattern.permute.xlu0 2
    %817 = vperm.xlu0 %816, %v42
    %v818 = vpop.permute.xlu0 %817
    %820 = vset.pattern.permute.xlu0 2
    %821 = vperm.xlu0 %820, %v43
    %v822 = vpop.permute.xlu0 %821
    %824 = vset.pattern.permute.xlu0 2
    %825 = vperm.xlu0 %824, %v44
    %v826 = vpop.permute.xlu0 %825
    %828 = vset.pattern.permute.xlu0 2
    %829 = vperm.xlu0 %828, %v45
    %v830 = vpop.permute.xlu0 %829
    %832 = vset.pattern.permute.xlu0 2
    %833 = vperm.xlu0 %832, %v46
    %v834 = vpop.permute.xlu0 %833
    %836 = vset.pattern.permute.xlu0 2
    %837 = vperm.xlu0 %836, %v47
    %v838 = vpop.permute.xlu0 %837
    %v841 = vsel %vm664, %v802, 0
    %v844 = vsel %vm664, %v803, 0
    %v847 = vsel %vm664, %v804, 0
    %v850 = vsel %vm664, %v805, 0
    %852 = vmatprep.subr.bf16.mxu0 0
    %853 = vmatpush1.bf16.msra.mxu0 %v806
    %854 = vmatprep.subr.bf16.mxu0 0
    %855 = vmatpush1.bf16.msra.mxu0 %v807
    %856 = vmatprep.subr.bf16.mxu0 0
    %857 = vmatpush1.bf16.msra.mxu0 0
    %858 = vmatprep.subr.bf16.mxu0 0
    %859 = vmatpush1.bf16.msra.mxu0 0
    %860 = vmatprep.subr.bf16.mxu0 0
    %861 = vmatpush1.bf16.msra.mxu0 0
    %862 = vmatprep.subr.bf16.mxu0 0
    %863 = vmatpush1.bf16.msra.mxu0 0
    %864 = vmatprep.subr.bf16.mxu0 0
    %865 = vmatpush1.bf16.msra.mxu0 0
    %866 = vmatprep.subr.bf16.mxu0 0
    %867 = vmatpush1.bf16.msra.mxu0 0
    %868 = vmatprep.subr.bf16.mxu0 0
    %869 = vmatpush1.bf16.msra.mxu0 0
    %870 = vmatprep.subr.bf16.mxu0 0
    %871 = vmatpush1.bf16.msra.mxu0 0
    %872 = vmatprep.subr.bf16.mxu0 0
    %873 = vmatpush1.bf16.msra.mxu0 0
    %874 = vmatprep.subr.bf16.mxu0 0
    %875 = vmatpush1.bf16.msra.mxu0 0
    %876 = vmatprep.subr.bf16.mxu0 0
    %877 = vmatpush1.bf16.msra.mxu0 0
    %878 = vmatprep.subr.bf16.mxu0 0
    %879 = vmatpush1.bf16.msra.mxu0 0
    %880 = vmatprep.subr.bf16.mxu0 0
    %881 = vmatpush1.bf16.msra.mxu0 0
    %882 = vmatprep.subr.bf16.mxu0 0
    %883 = vmatpush1.bf16.msra.mxu0 0
    %884 = vmatprep.mubr.bf16.mxu0 0
    %885 = vmatmul.mubr.bf16.gmra.mrb[0].mxu0 %v841
    %v886 = vpop.f32.mrb[0].mxu0
    %v887 = vadd.f32 %v810, %v886
    %v888 = vpop.f32.mrb[0].mxu0
    %v889 = vpop.f32.mrb[0].mxu0
    %v890 = vadd.f32 %v814, %v889
    %v891 = vpop.f32.mrb[0].mxu0
    %892 = vmatprep.mubr.bf16.mxu0 0
    %893 = vmatmul.mubr.bf16.gmra.mrb[0].mxu0 %v844
    %v894 = vpop.f32.mrb[0].mxu0
    %v895 = vadd.f32 %v818, %v894
    %v896 = vpop.f32.mrb[0].mxu0
    %v897 = vpop.f32.mrb[0].mxu0
    %v898 = vadd.f32 %v822, %v897
    %v899 = vpop.f32.mrb[0].mxu0
    %900 = vmatprep.mubr.bf16.mxu0 0
    %901 = vmatmul.mubr.bf16.gmra.mrb[0].mxu0 %v847
    %v902 = vpop.f32.mrb[0].mxu0
    %v903 = vadd.f32 %v826, %v902
    %v904 = vpop.f32.mrb[0].mxu0
    %v905 = vpop.f32.mrb[0].mxu0
    %v906 = vadd.f32 %v830, %v905
    %v907 = vpop.f32.mrb[0].mxu0
    %908 = vmatprep.mubr.bf16.mxu0 0
    %909 = vmatmul.mubr.bf16.gmra.mrb[0].mxu0 %v850
    %v910 = vpop.f32.mrb[0].mxu0
    %v911 = vadd.f32 %v834, %v910
    %v912 = vpop.f32.mrb[0].mxu0
    %v913 = vpop.f32.mrb[0].mxu0
    %v914 = vadd.f32 %v838, %v913
    %v915 = vpop.f32.mrb[0].mxu0
    %916 = vdwg.mxu0
    %v917 = vpack.c.bf16 %v37, %v36
    %v918 = vpack.c.bf16 %v39, %v38
    %923 = vrot.lane.b32.xlu0 %v802, 96
    %v924 = vpop.permute.xlu0 %923
    %925 = vrot.lane.b32.xlu0 %v803, 96
    %v926 = vpop.permute.xlu0 %925
    %927 = vrot.lane.b32.xlu0 %v804, 96
    %v928 = vpop.permute.xlu0 %927
    %929 = vrot.lane.b32.xlu0 %v805, 96
    %v930 = vpop.permute.xlu0 %929
    %v932 = vsel %vm664, %v924, 0
    %v935 = vsel %vm664, %v926, 0
    %v938 = vsel %vm664, %v928, 0
    %v941 = vsel %vm664, %v930, 0
    %943 = vmatprep.subr.bf16.mxu0 0
    %944 = vmatpush1.bf16.msra.mxu0 %v917
    %945 = vmatprep.subr.bf16.mxu0 0
    %946 = vmatpush1.bf16.msra.mxu0 %v918
    %947 = vmatprep.subr.bf16.mxu0 0
    %948 = vmatpush1.bf16.msra.mxu0 0
    %949 = vmatprep.subr.bf16.mxu0 0
    %950 = vmatpush1.bf16.msra.mxu0 0
    %951 = vmatprep.subr.bf16.mxu0 0
    %952 = vmatpush1.bf16.msra.mxu0 0
    %953 = vmatprep.subr.bf16.mxu0 0
    %954 = vmatpush1.bf16.msra.mxu0 0
    %955 = vmatprep.subr.bf16.mxu0 0
    %956 = vmatpush1.bf16.msra.mxu0 0
    %957 = vmatprep.subr.bf16.mxu0 0
    %958 = vmatpush1.bf16.msra.mxu0 0
    %959 = vmatprep.subr.bf16.mxu0 0
    %960 = vmatpush1.bf16.msra.mxu0 0
    %961 = vmatprep.subr.bf16.mxu0 0
    %962 = vmatpush1.bf16.msra.mxu0 0
    %963 = vmatprep.subr.bf16.mxu0 0
    %964 = vmatpush1.bf16.msra.mxu0 0
    %965 = vmatprep.subr.bf16.mxu0 0
    %966 = vmatpush1.bf16.msra.mxu0 0
    %967 = vmatprep.subr.bf16.mxu0 0
    %968 = vmatpush1.bf16.msra.mxu0 0
    %969 = vmatprep.subr.bf16.mxu0 0
    %970 = vmatpush1.bf16.msra.mxu0 0
    %971 = vmatprep.subr.bf16.mxu0 0
    %972 = vmatpush1.bf16.msra.mxu0 0
    %973 = vmatprep.subr.bf16.mxu0 0
    %974 = vmatpush1.bf16.msra.mxu0 0
    %975 = vmatprep.mubr.bf16.mxu0 0
    %976 = vmatmul.mubr.bf16.gmra.mrb[0].mxu0 %v932
    %v977 = vpop.f32.mrb[0].mxu0
    %v978 = vadd.f32 0.0, %v977
    %v979 = vpop.f32.mrb[0].mxu0
    %v980 = vpop.f32.mrb[0].mxu0
    %v981 = vadd.f32 0.0, %v980
    %v982 = vpop.f32.mrb[0].mxu0
    %983 = vmatprep.mubr.bf16.mxu0 0
    %984 = vmatmul.mubr.bf16.gmra.mrb[0].mxu0 %v935
    %v985 = vpop.f32.mrb[0].mxu0
    %v986 = vadd.f32 0.0, %v985
    %v987 = vpop.f32.mrb[0].mxu0
    %v988 = vpop.f32.mrb[0].mxu0
    %v989 = vadd.f32 0.0, %v988
    %v990 = vpop.f32.mrb[0].mxu0
    %991 = vmatprep.mubr.bf16.mxu0 0
    %992 = vmatmul.mubr.bf16.gmra.mrb[0].mxu0 %v938
    %v993 = vpop.f32.mrb[0].mxu0
    %v994 = vadd.f32 0.0, %v993
    %v995 = vpop.f32.mrb[0].mxu0
    %v996 = vpop.f32.mrb[0].mxu0
    %v997 = vadd.f32 0.0, %v996
    %v998 = vpop.f32.mrb[0].mxu0
    %999 = vmatprep.mubr.bf16.mxu0 0
    %1000 = vmatmul.mubr.bf16.gmra.mrb[0].mxu0 %v941
    %v1001 = vpop.f32.mrb[0].mxu0
    %v1002 = vadd.f32 0.0, %v1001
    %v1003 = vpop.f32.mrb[0].mxu0
    %v1004 = vpop.f32.mrb[0].mxu0
    %v1005 = vadd.f32 0.0, %v1004
    %v1006 = vpop.f32.mrb[0].mxu0
    %1007 = vdwg.mxu0
    %1008 = vset.pattern.permute.xlu0 20
    %1009 = vperm.xlu0 %1008, %v523
    %v1010 = vpop.permute.xlu0 %1009
    %1012 = vset.pattern.permute.xlu0 20
    %1013 = vperm.xlu0 %1012, %v524
    %v1014 = vpop.permute.xlu0 %1013
    %1016 = vset.pattern.permute.xlu0 20
    %1017 = vperm.xlu0 %1016, %v525
    %v1018 = vpop.permute.xlu0 %1017
    %1020 = vset.pattern.permute.xlu0 20
    %1021 = vperm.xlu0 %1020, %v526
    %v1022 = vpop.permute.xlu0 %1021
    %v1024 = vlaneseq
    %v1025 = vshrl.u32 %v1024, 7
    %v1026 = vsub.s32 0, %v1025
    %v1027 = vrot.slane %v34, %v1026
    %v1028 = vlaneseq
    %v1029 = vshrl.u32 %v1028, 7
    %v1030 = vsub.s32 0, %v1029
    %v1031 = vrot.slane %v35, %v1030
    %v1032 = vmul.f32 %v1010, %v1027
    %v1033 = vmul.f32 %v1010, %v1031
    %v1034 = vmul.f32 %v1014, %v1027
    %v1035 = vmul.f32 %v1014, %v1031
    %v1036 = vmul.f32 %v1018, %v1027
    %v1037 = vmul.f32 %v1018, %v1031
    %v1038 = vmul.f32 %v1022, %v1027
    %v1039 = vmul.f32 %v1022, %v1031
    %1040 = vset.pattern.permute.xlu0 21
    %1041 = vperm.xlu0 %1040, %v523
    %v1042 = vpop.permute.xlu0 %1041
    %1044 = vset.pattern.permute.xlu0 21
    %1045 = vperm.xlu0 %1044, %v524
    %v1046 = vpop.permute.xlu0 %1045
    %1048 = vset.pattern.permute.xlu0 21
    %1049 = vperm.xlu0 %1048, %v525
    %v1050 = vpop.permute.xlu0 %1049
    %1052 = vset.pattern.permute.xlu0 21
    %1053 = vperm.xlu0 %1052, %v526
    %v1054 = vpop.permute.xlu0 %1053
    %v1056 = vlaneseq
    %v1057 = vshrl.u32 %v1056, 7
    %v1058 = vsub.s32 1, %v1057
    %v1059 = vrot.slane %v34, %v1058
    %v1060 = vlaneseq
    %v1061 = vshrl.u32 %v1060, 7
    %v1062 = vsub.s32 1, %v1061
    %v1063 = vrot.slane %v35, %v1062
    %v1064 = vmul.f32 %v1042, %v1059
    %v1065 = vmul.f32 %v1042, %v1063
    %v1066 = vmul.f32 %v1046, %v1059
    %v1067 = vmul.f32 %v1046, %v1063
    %v1068 = vmul.f32 %v1050, %v1059
    %v1069 = vmul.f32 %v1050, %v1063
    %v1070 = vmul.f32 %v1054, %v1059
    %v1071 = vmul.f32 %v1054, %v1063
    %v1072 = vadd.f32 %v1032, %v1064
    %v1073 = vadd.f32 %v1033, %v1065
    %v1074 = vadd.f32 %v1034, %v1066
    %v1075 = vadd.f32 %v1035, %v1067
    %v1076 = vadd.f32 %v1036, %v1068
    %v1077 = vadd.f32 %v1037, %v1069
    %v1078 = vadd.f32 %v1038, %v1070
    %v1079 = vadd.f32 %v1039, %v1071
    %1080 = vset.pattern.permute.xlu0 22
    %1081 = vperm.xlu0 %1080, %v523
    %v1082 = vpop.permute.xlu0 %1081
    %1084 = vset.pattern.permute.xlu0 22
    %1085 = vperm.xlu0 %1084, %v524
    %v1086 = vpop.permute.xlu0 %1085
    %1088 = vset.pattern.permute.xlu0 22
    %1089 = vperm.xlu0 %1088, %v525
    %v1090 = vpop.permute.xlu0 %1089
    %1092 = vset.pattern.permute.xlu0 22
    %1093 = vperm.xlu0 %1092, %v526
    %v1094 = vpop.permute.xlu0 %1093
    %v1096 = vlaneseq
    %v1097 = vshrl.u32 %v1096, 7
    %v1098 = vsub.s32 2, %v1097
    %v1099 = vrot.slane %v34, %v1098
    %v1100 = vlaneseq
    %v1101 = vshrl.u32 %v1100, 7
    %v1102 = vsub.s32 2, %v1101
    %v1103 = vrot.slane %v35, %v1102
    %v1104 = vmul.f32 %v1082, %v1099
    %v1105 = vmul.f32 %v1082, %v1103
    %v1106 = vmul.f32 %v1086, %v1099
    %v1107 = vmul.f32 %v1086, %v1103
    %v1108 = vmul.f32 %v1090, %v1099
    %v1109 = vmul.f32 %v1090, %v1103
    %v1110 = vmul.f32 %v1094, %v1099
    %v1111 = vmul.f32 %v1094, %v1103
    %v1112 = vadd.f32 %v1072, %v1104
    %v1113 = vadd.f32 %v1073, %v1105
    %v1114 = vadd.f32 %v1074, %v1106
    %v1115 = vadd.f32 %v1075, %v1107
    %v1116 = vadd.f32 %v1076, %v1108
    %v1117 = vadd.f32 %v1077, %v1109
    %v1118 = vadd.f32 %v1078, %v1110
    %v1119 = vadd.f32 %v1079, %v1111
    %1120 = vset.pattern.permute.xlu0 6
    %1121 = vperm.xlu0 %1120, %v523
    %v1122 = vpop.permute.xlu0 %1121
    %1124 = vset.pattern.permute.xlu0 6
    %1125 = vperm.xlu0 %1124, %v524
    %v1126 = vpop.permute.xlu0 %1125
    %1128 = vset.pattern.permute.xlu0 6
    %1129 = vperm.xlu0 %1128, %v525
    %v1130 = vpop.permute.xlu0 %1129
    %1132 = vset.pattern.permute.xlu0 6
    %1133 = vperm.xlu0 %1132, %v526
    %v1134 = vpop.permute.xlu0 %1133
    %v1136 = vadd.f32 %v1112, %v1122
    %v1137 = vadd.f32 %v1113, %v1122
    %v1138 = vadd.f32 %v1114, %v1126
    %v1139 = vadd.f32 %v1115, %v1126
    %v1140 = vadd.f32 %v1116, %v1130
    %v1141 = vadd.f32 %v1117, %v1130
    %v1142 = vadd.f32 %v1118, %v1134
    %v1143 = vadd.f32 %v1119, %v1134
    %1145 = vset.pattern.permute.xlu0 0
    %1146 = vperm.xlu0 %1145, %v978
    %v1147 = vpop.permute.xlu0 %1146
    %1150 = vset.pattern.permute.xlu0 0
    %1151 = vperm.xlu0 %1150, %v981
    %v1152 = vpop.permute.xlu0 %1151
    %1155 = vset.pattern.permute.xlu0 0
    %1156 = vperm.xlu0 %1155, %v986
    %v1157 = vpop.permute.xlu0 %1156
    %1160 = vset.pattern.permute.xlu0 0
    %1161 = vperm.xlu0 %1160, %v989
    %v1162 = vpop.permute.xlu0 %1161
    %vm1164 = vcmp.ge.s32.totalorder %v32, 128
    %vm1165 = vcmp.ge.s32.totalorder %v33, 128
    %1166 = vset.pattern.permute.xlu0 1
    %1167 = vperm.xlu0 %1166, %v978
    %v1168 = vpop.permute.xlu0 %1167
    %1170 = vset.pattern.permute.xlu0 1
    %1171 = vperm.xlu0 %1170, %v981
    %v1172 = vpop.permute.xlu0 %1171
    %1174 = vset.pattern.permute.xlu0 1
    %1175 = vperm.xlu0 %1174, %v986
    %v1176 = vpop.permute.xlu0 %1175
    %1178 = vset.pattern.permute.xlu0 1
    %1179 = vperm.xlu0 %1178, %v989
    %v1180 = vpop.permute.xlu0 %1179
    %v1182 = vsel %vm1164, %v1168, %v1147
    %v1183 = vsel %vm1165, %v1168, %v1147
    %v1184 = vsel %vm1164, %v1172, %v1152
    %v1185 = vsel %vm1165, %v1172, %v1152
    %v1186 = vsel %vm1164, %v1176, %v1157
    %v1187 = vsel %vm1165, %v1176, %v1157
    %v1188 = vsel %vm1164, %v1180, %v1162
    %v1189 = vsel %vm1165, %v1180, %v1162
    %v1190 = vadd.f32 %v1136, %v1182
    %v1191 = vadd.f32 %v1137, %v1183
    %v1192 = vadd.f32 %v1138, %v1184
    %v1193 = vadd.f32 %v1139, %v1185
    %v1194 = vadd.f32 %v1140, %v1186
    %v1195 = vadd.f32 %v1141, %v1187
    %v1196 = vadd.f32 %v1142, %v1188
    %v1197 = vadd.f32 %v1143, %v1189
    %v1198 = vmax.f32 %v1190, 0.0
    %v1199 = vmax.f32 %v1191, 0.0
    %v1200 = vmax.f32 %v1192, 0.0
    %v1201 = vmax.f32 %v1193, 0.0
    %v1202 = vmax.f32 %v1194, 0.0
    %v1203 = vmax.f32 %v1195, 0.0
    %v1204 = vmax.f32 %v1196, 0.0
    %v1205 = vmax.f32 %v1197, 0.0
    %v1206 = vld [vmem:[%s2 + $0x40] sm:$0xff]
    %v1207 = vld [vmem:[%s2 + $0x48] sm:$0xff]
    %v1208 = vld [vmem:[%s2 + $0x50] sm:$0xff]
    %v1209 = vld [vmem:[%s2 + $0x58] sm:$0xff]
    %v1210 = vpack.c.bf16 %v1207, %v1206
    %v1211 = vpack.c.bf16 %v1209, %v1208
    %v1212 = vpack.c.bf16 %v1200, %v1198
    %v1213 = vpack.c.bf16 %v1201, %v1199
    %v1214 = vpack.c.bf16 %v1204, %v1202
    %v1215 = vpack.c.bf16 %v1205, %v1203
    %1216 = vset.pattern.permute.xlu0 7
    %1217 = vperm.xlu0 %1216, %v523
    %v1218 = vpop.permute.xlu0 %1217
    %1220 = vset.pattern.permute.xlu0 7
    %1221 = vperm.xlu0 %1220, %v524
    %v1222 = vpop.permute.xlu0 %1221
    %1224 = vset.pattern.permute.xlu0 7
    %1225 = vperm.xlu0 %1224, %v525
    %v1226 = vpop.permute.xlu0 %1225
    %1228 = vset.pattern.permute.xlu0 7
    %1229 = vperm.xlu0 %1228, %v526
    %v1230 = vpop.permute.xlu0 %1229
    %1234 = vrot.lane.b32.xlu0 %v1210, 64
    %v1235 = vpop.permute.xlu0 %1234
    %1236 = vrot.lane.b32.xlu0 %v1211, 64
    %v1237 = vpop.permute.xlu0 %1236
    %v1239 = vsel %vm664, %v1235, 0
    %v1242 = vsel %vm664, %v1237, 0
    %1244 = vmatprep.subr.bf16.mxu0 %v1213
    %1245 = vmatpush1.bf16.msra.mxu0 %v1212
    %1246 = vmatprep.subr.bf16.mxu0 %v1215
    %1247 = vmatpush1.bf16.msra.mxu0 %v1214
    %1248 = vmatprep.subr.bf16.mxu0 0
    %1249 = vmatpush1.bf16.msra.mxu0 0
    %1250 = vmatprep.subr.bf16.mxu0 0
    %1251 = vmatpush1.bf16.msra.mxu0 0
    %1252 = vmatprep.subr.bf16.mxu0 0
    %1253 = vmatpush1.bf16.msra.mxu0 0
    %1254 = vmatprep.subr.bf16.mxu0 0
    %1255 = vmatpush1.bf16.msra.mxu0 0
    %1256 = vmatprep.subr.bf16.mxu0 0
    %1257 = vmatpush1.bf16.msra.mxu0 0
    %1258 = vmatprep.subr.bf16.mxu0 0
    %1259 = vmatpush1.bf16.msra.mxu0 0
    %1260 = vmatprep.subr.bf16.mxu0 0
    %1261 = vmatpush1.bf16.msra.mxu0 0
    %1262 = vmatprep.subr.bf16.mxu0 0
    %1263 = vmatpush1.bf16.msra.mxu0 0
    %1264 = vmatprep.subr.bf16.mxu0 0
    %1265 = vmatpush1.bf16.msra.mxu0 0
    %1266 = vmatprep.subr.bf16.mxu0 0
    %1267 = vmatpush1.bf16.msra.mxu0 0
    %1268 = vmatprep.subr.bf16.mxu0 0
    %1269 = vmatpush1.bf16.msra.mxu0 0
    %1270 = vmatprep.subr.bf16.mxu0 0
    %1271 = vmatpush1.bf16.msra.mxu0 0
    %1272 = vmatprep.subr.bf16.mxu0 0
    %1273 = vmatpush1.bf16.msra.mxu0 0
    %1274 = vmatprep.subr.bf16.mxu0 0
    %1275 = vmatpush1.bf16.msra.mxu0 0
    %1276 = vmatprep.mubr.bf16.mxu0 0
    %1277 = vmatmul.mubr.bf16.gmra.mrb[0].mxu0 %v1239
    %v1278 = vpop.f32.mrb[0].mxu0
    %v1279 = vadd.f32 %v1218, %v1278
    %v1280 = vpop.f32.mrb[0].mxu0
    %v1281 = vadd.f32 %v1218, %v1280
    %v1282 = vpop.f32.mrb[0].mxu0
    %v1283 = vadd.f32 %v1222, %v1282
    %v1284 = vpop.f32.mrb[0].mxu0
    %v1285 = vadd.f32 %v1222, %v1284
    %1286 = vmatprep.mubr.bf16.mxu0 0
    %1287 = vmatmul.mubr.bf16.gmra.mrb[0].mxu0 %v1242
    %v1288 = vpop.f32.mrb[0].mxu0
    %v1289 = vadd.f32 %v1226, %v1288
    %v1290 = vpop.f32.mrb[0].mxu0
    %v1291 = vadd.f32 %v1226, %v1290
    %v1292 = vpop.f32.mrb[0].mxu0
    %v1293 = vadd.f32 %v1230, %v1292
    %v1294 = vpop.f32.mrb[0].mxu0
    %v1295 = vadd.f32 %v1230, %v1294
    %1296 = vdwg.mxu0
    %v1297 = vmax.f32 %v1279, 0.0
    %v1298 = vmax.f32 %v1281, 0.0
    %v1299 = vmax.f32 %v1283, 0.0
    %v1300 = vmax.f32 %v1285, 0.0
    %v1301 = vmax.f32 %v1289, 0.0
    %v1302 = vmax.f32 %v1291, 0.0
    %v1303 = vmax.f32 %v1293, 0.0
    %v1304 = vmax.f32 %v1295, 0.0
    %v1305 = vpack.c.bf16 %v1299, %v1297
    %v1306 = vpack.c.bf16 %v1300, %v1298
    %v1307 = vpack.c.bf16 %v1303, %v1301
    %v1308 = vpack.c.bf16 %v1304, %v1302
    %1309 = vset.pattern.permute.xlu0 8
    %1310 = vperm.xlu0 %1309, %v523
    %v1311 = vpop.permute.xlu0 %1310
    %1313 = vset.pattern.permute.xlu0 8
    %1314 = vperm.xlu0 %1313, %v524
    %v1315 = vpop.permute.xlu0 %1314
    %1317 = vset.pattern.permute.xlu0 8
    %1318 = vperm.xlu0 %1317, %v525
    %v1319 = vpop.permute.xlu0 %1318
    %1321 = vset.pattern.permute.xlu0 8
    %1322 = vperm.xlu0 %1321, %v526
    %v1323 = vpop.permute.xlu0 %1322
    %1325 = vrot.lane.b32.xlu0 %v804, 64
    %v1326 = vpop.permute.xlu0 %1325
    %1327 = vrot.lane.b32.xlu0 %v805, 64
    %v1328 = vpop.permute.xlu0 %1327
    %v1330 = vsel %vm664, %v1326, 0
    %v1333 = vsel %vm664, %v1328, 0
    %1335 = vmatprep.subr.bf16.mxu0 %v1306
    %1336 = vmatpush1.bf16.msra.mxu0 %v1305
    %1337 = vmatprep.subr.bf16.mxu0 %v1308
    %1338 = vmatpush1.bf16.msra.mxu0 %v1307
    %1339 = vmatprep.subr.bf16.mxu0 0
    %1340 = vmatpush1.bf16.msra.mxu0 0
    %1341 = vmatprep.subr.bf16.mxu0 0
    %1342 = vmatpush1.bf16.msra.mxu0 0
    %1343 = vmatprep.subr.bf16.mxu0 0
    %1344 = vmatpush1.bf16.msra.mxu0 0
    %1345 = vmatprep.subr.bf16.mxu0 0
    %1346 = vmatpush1.bf16.msra.mxu0 0
    %1347 = vmatprep.subr.bf16.mxu0 0
    %1348 = vmatpush1.bf16.msra.mxu0 0
    %1349 = vmatprep.subr.bf16.mxu0 0
    %1350 = vmatpush1.bf16.msra.mxu0 0
    %1351 = vmatprep.subr.bf16.mxu0 0
    %1352 = vmatpush1.bf16.msra.mxu0 0
    %1353 = vmatprep.subr.bf16.mxu0 0
    %1354 = vmatpush1.bf16.msra.mxu0 0
    %1355 = vmatprep.subr.bf16.mxu0 0
    %1356 = vmatpush1.bf16.msra.mxu0 0
    %1357 = vmatprep.subr.bf16.mxu0 0
    %1358 = vmatpush1.bf16.msra.mxu0 0
    %1359 = vmatprep.subr.bf16.mxu0 0
    %1360 = vmatpush1.bf16.msra.mxu0 0
    %1361 = vmatprep.subr.bf16.mxu0 0
    %1362 = vmatpush1.bf16.msra.mxu0 0
    %1363 = vmatprep.subr.bf16.mxu0 0
    %1364 = vmatpush1.bf16.msra.mxu0 0
    %1365 = vmatprep.subr.bf16.mxu0 0
    %1366 = vmatpush1.bf16.msra.mxu0 0
    %1367 = vmatprep.mubr.bf16.mxu0 0
    %1368 = vmatmul.mubr.bf16.gmra.mrb[0].mxu0 %v1330
    %v1369 = vpop.f32.mrb[0].mxu0
    %v1370 = vadd.f32 %v1311, %v1369
    %v1371 = vpop.f32.mrb[0].mxu0
    %v1372 = vadd.f32 %v1311, %v1371
    %v1373 = vpop.f32.mrb[0].mxu0
    %v1374 = vadd.f32 %v1315, %v1373
    %v1375 = vpop.f32.mrb[0].mxu0
    %v1376 = vadd.f32 %v1315, %v1375
    %1377 = vmatprep.mubr.bf16.mxu0 0
    %1378 = vmatmul.mubr.bf16.gmra.mrb[0].mxu0 %v1333
    %v1379 = vpop.f32.mrb[0].mxu0
    %v1380 = vadd.f32 %v1319, %v1379
    %v1381 = vpop.f32.mrb[0].mxu0
    %v1382 = vadd.f32 %v1319, %v1381
    %v1383 = vpop.f32.mrb[0].mxu0
    %v1384 = vadd.f32 %v1323, %v1383
    %v1385 = vpop.f32.mrb[0].mxu0
    %v1386 = vadd.f32 %v1323, %v1385
    %1387 = vdwg.mxu0
    %v1388 = vmax.f32 %v1370, 0.0
    %v1389 = vmax.f32 %v1372, 0.0
    %v1390 = vmax.f32 %v1374, 0.0
    %v1391 = vmax.f32 %v1376, 0.0
    %v1392 = vmax.f32 %v1380, 0.0
    %v1393 = vmax.f32 %v1382, 0.0
    %v1394 = vmax.f32 %v1384, 0.0
    %v1395 = vmax.f32 %v1386, 0.0
    %v1396 = vpack.c.bf16 %v1390, %v1388
    %v1397 = vpack.c.bf16 %v1391, %v1389
    %v1398 = vpack.c.bf16 %v1394, %v1392
    %v1399 = vpack.c.bf16 %v1395, %v1393
    %1400 = vset.pattern.permute.xlu0 9
    %1401 = vperm.xlu0 %1400, %v523
    %v1402 = vpop.permute.xlu0 %1401
    %1404 = vset.pattern.permute.xlu0 9
    %1405 = vperm.xlu0 %1404, %v524
    %v1406 = vpop.permute.xlu0 %1405
    %1408 = vset.pattern.permute.xlu0 9
    %1409 = vperm.xlu0 %1408, %v525
    %v1410 = vpop.permute.xlu0 %1409
    %1412 = vset.pattern.permute.xlu0 9
    %1413 = vperm.xlu0 %1412, %v526
    %v1414 = vpop.permute.xlu0 %1413
    %1416 = vrot.lane.b32.xlu0 %v1210, 32
    %v1417 = vpop.permute.xlu0 %1416
    %1418 = vrot.lane.b32.xlu0 %v1211, 32
    %v1419 = vpop.permute.xlu0 %1418
    %v1421 = vsel %vm664, %v1417, 0
    %v1424 = vsel %vm664, %v1419, 0
    %1426 = vmatprep.subr.bf16.mxu0 %v1397
    %1427 = vmatpush1.bf16.msra.mxu0 %v1396
    %1428 = vmatprep.subr.bf16.mxu0 %v1399
    %1429 = vmatpush1.bf16.msra.mxu0 %v1398
    %1430 = vmatprep.subr.bf16.mxu0 0
    %1431 = vmatpush1.bf16.msra.mxu0 0
    %1432 = vmatprep.subr.bf16.mxu0 0
    %1433 = vmatpush1.bf16.msra.mxu0 0
    %1434 = vmatprep.subr.bf16.mxu0 0
    %1435 = vmatpush1.bf16.msra.mxu0 0
    %1436 = vmatprep.subr.bf16.mxu0 0
    %1437 = vmatpush1.bf16.msra.mxu0 0
    %1438 = vmatprep.subr.bf16.mxu0 0
    %1439 = vmatpush1.bf16.msra.mxu0 0
    %1440 = vmatprep.subr.bf16.mxu0 0
    %1441 = vmatpush1.bf16.msra.mxu0 0
    %1442 = vmatprep.subr.bf16.mxu0 0
    %1443 = vmatpush1.bf16.msra.mxu0 0
    %1444 = vmatprep.subr.bf16.mxu0 0
    %1445 = vmatpush1.bf16.msra.mxu0 0
    %1446 = vmatprep.subr.bf16.mxu0 0
    %1447 = vmatpush1.bf16.msra.mxu0 0
    %1448 = vmatprep.subr.bf16.mxu0 0
    %1449 = vmatpush1.bf16.msra.mxu0 0
    %1450 = vmatprep.subr.bf16.mxu0 0
    %1451 = vmatpush1.bf16.msra.mxu0 0
    %1452 = vmatprep.subr.bf16.mxu0 0
    %1453 = vmatpush1.bf16.msra.mxu0 0
    %1454 = vmatprep.subr.bf16.mxu0 0
    %1455 = vmatpush1.bf16.msra.mxu0 0
    %1456 = vmatprep.subr.bf16.mxu0 0
    %1457 = vmatpush1.bf16.msra.mxu0 0
    %1458 = vmatprep.mubr.bf16.mxu0 0
    %1459 = vmatmul.mubr.bf16.gmra.mrb[0].mxu0 %v1421
    %v1460 = vpop.f32.mrb[0].mxu0
    %v1461 = vadd.f32 %v1402, %v1460
    %v1462 = vpop.f32.mrb[0].mxu0
    %v1463 = vadd.f32 %v1402, %v1462
    %v1464 = vpop.f32.mrb[0].mxu0
    %v1465 = vadd.f32 %v1406, %v1464
    %v1466 = vpop.f32.mrb[0].mxu0
    %v1467 = vadd.f32 %v1406, %v1466
    %1468 = vmatprep.mubr.bf16.mxu0 0
    %1469 = vmatmul.mubr.bf16.gmra.mrb[0].mxu0 %v1424
    %v1470 = vpop.f32.mrb[0].mxu0
    %v1471 = vadd.f32 %v1410, %v1470
    %v1472 = vpop.f32.mrb[0].mxu0
    %v1473 = vadd.f32 %v1410, %v1472
    %v1474 = vpop.f32.mrb[0].mxu0
    %v1475 = vadd.f32 %v1414, %v1474
    %v1476 = vpop.f32.mrb[0].mxu0
    %v1477 = vadd.f32 %v1414, %v1476
    %1478 = vdwg.mxu0
    %1479 = vmax.xlane.f32.xlu0 %v1461
    %v1480 = vpop.xlane.xlu0 %1479
    %1481 = vmax.xlane.f32.xlu0 %v1465
    %v1482 = vpop.xlane.xlu0 %1481
    %1483 = vmax.xlane.f32.xlu0 %v1471
    %v1484 = vpop.xlane.xlu0 %1483
    %1485 = vmax.xlane.f32.xlu0 %v1475
    %v1486 = vpop.xlane.xlu0 %1485
    %1487 = vmax.xlane.f32.xlu0 %v1463
    %v1488 = vpop.xlane.xlu0 %1487
    %1489 = vmax.xlane.f32.xlu0 %v1467
    %v1490 = vpop.xlane.xlu0 %1489
    %1491 = vmax.xlane.f32.xlu0 %v1473
    %v1492 = vpop.xlane.xlu0 %1491
    %1493 = vmax.xlane.f32.xlu0 %v1477
    %v1494 = vpop.xlane.xlu0 %1493
    %v1495 = vsel %vm506, %v1480, %v1488
    %v1496 = vsel %vm506, %v1482, %v1490
    %v1497 = vsel %vm506, %v1484, %v1492
    %v1498 = vsel %vm506, %v1486, %v1494
    %v1499 = vadd.f32 %v903, %v1495
    %v1500 = vadd.f32 %v906, %v1496
    %v1501 = vadd.f32 %v911, %v1497
    %v1502 = vadd.f32 %v914, %v1498
    %v1503 = vpack.c.bf16 %v890, %v887
    %v1504 = vpack.c.bf16 %v898, %v895
    %v1505 = vpack.c.bf16 %v1500, %v1499
    %v1506 = vpack.c.bf16 %v1502, %v1501
    %1509 = vrot.lane.b32.xlu0 %v330, 64
    %v1510 = vpop.permute.xlu0 %1509
    %1511 = vrot.lane.b32.xlu0 %v331, 64
    %v1512 = vpop.permute.xlu0 %1511
    %v1514 = vsel %vm372, %v1510, 0
    %v1517 = vsel %vm372, %v1512, 0
    %1519 = vmatprep.subr.bf16.mxu0 0
    %1520 = vmatpush1.bf16.msra.mxu0 %v1503
    %1521 = vmatprep.subr.bf16.mxu0 0
    %1522 = vmatpush1.bf16.msra.mxu0 %v1504
    %1523 = vmatprep.subr.bf16.mxu0 0
    %1524 = vmatpush1.bf16.msra.mxu0 %v1505
    %1525 = vmatprep.subr.bf16.mxu0 0
    %1526 = vmatpush1.bf16.msra.mxu0 %v1506
    %1527 = vmatprep.subr.bf16.mxu0 0
    %1528 = vmatpush1.bf16.msra.mxu0 0
    %1529 = vmatprep.subr.bf16.mxu0 0
    %1530 = vmatpush1.bf16.msra.mxu0 0
    %1531 = vmatprep.subr.bf16.mxu0 0
    %1532 = vmatpush1.bf16.msra.mxu0 0
    %1533 = vmatprep.subr.bf16.mxu0 0
    %1534 = vmatpush1.bf16.msra.mxu0 0
    %1535 = vmatprep.subr.bf16.mxu0 0
    %1536 = vmatpush1.bf16.msra.mxu0 0
    %1537 = vmatprep.subr.bf16.mxu0 0
    %1538 = vmatpush1.bf16.msra.mxu0 0
    %1539 = vmatprep.subr.bf16.mxu0 0
    %1540 = vmatpush1.bf16.msra.mxu0 0
    %1541 = vmatprep.subr.bf16.mxu0 0
    %1542 = vmatpush1.bf16.msra.mxu0 0
    %1543 = vmatprep.subr.bf16.mxu0 0
    %1544 = vmatpush1.bf16.msra.mxu0 0
    %1545 = vmatprep.subr.bf16.mxu0 0
    %1546 = vmatpush1.bf16.msra.mxu0 0
    %1547 = vmatprep.subr.bf16.mxu0 0
    %1548 = vmatpush1.bf16.msra.mxu0 0
    %1549 = vmatprep.subr.bf16.mxu0 0
    %1550 = vmatpush1.bf16.msra.mxu0 0
    %1551 = vmatprep.mubr.bf16.mxu0 0
    %1552 = vmatmul.mubr.bf16.gmra.mrb[0].mxu0 %v1514
    %v1553 = vpop.f32.mrb[0].mxu0
    %v1554 = vadd.f32 %v994, %v1553
    %v1555 = vpop.f32.mrb[0].mxu0
    %v1556 = vpop.f32.mrb[0].mxu0
    %v1557 = vadd.f32 %v997, %v1556
    %v1558 = vpop.f32.mrb[0].mxu0
    %1559 = vmatprep.mubr.bf16.mxu0 0
    %1560 = vmatmul.mubr.bf16.gmra.mrb[0].mxu0 %v1517
    %v1561 = vpop.f32.mrb[0].mxu0
    %v1562 = vadd.f32 %v1002, %v1561
    %v1563 = vpop.f32.mrb[0].mxu0
    %v1564 = vpop.f32.mrb[0].mxu0
    %v1565 = vadd.f32 %v1005, %v1564
    %v1566 = vpop.f32.mrb[0].mxu0
    %1567 = vdwg.mxu0
    %v1568 = vpack.c.bf16 %v1465, %v1461
    %v1569 = vpack.c.bf16 %v1467, %v1463
    %v1570 = vpack.c.bf16 %v1475, %v1471
    %v1571 = vpack.c.bf16 %v1477, %v1473
    %1573 = vset.pattern.permute.xlu0 0
    %1574 = vperm.xlu0 %1573, %v1554
    %v1575 = vpop.permute.xlu0 %1574
    %1578 = vset.pattern.permute.xlu0 0
    %1579 = vperm.xlu0 %1578, %v1557
    %v1580 = vpop.permute.xlu0 %1579
    %1583 = vset.pattern.permute.xlu0 0
    %1584 = vperm.xlu0 %1583, %v1562
    %v1585 = vpop.permute.xlu0 %1584
    %1588 = vset.pattern.permute.xlu0 0
    %1589 = vperm.xlu0 %1588, %v1565
    %v1590 = vpop.permute.xlu0 %1589
    %1592 = vset.pattern.permute.xlu0 1
    %1593 = vperm.xlu0 %1592, %v1554
    %v1594 = vpop.permute.xlu0 %1593
    %1596 = vset.pattern.permute.xlu0 1
    %1597 = vperm.xlu0 %1596, %v1557
    %v1598 = vpop.permute.xlu0 %1597
    %1600 = vset.pattern.permute.xlu0 1
    %1601 = vperm.xlu0 %1600, %v1562
    %v1602 = vpop.permute.xlu0 %1601
    %1604 = vset.pattern.permute.xlu0 1
    %1605 = vperm.xlu0 %1604, %v1565
    %v1606 = vpop.permute.xlu0 %1605
    %v1608 = vsel %vm1164, %v1594, %v1575
    %v1609 = vsel %vm1165, %v1594, %v1575
    %v1610 = vsel %vm1164, %v1598, %v1580
    %v1611 = vsel %vm1165, %v1598, %v1580
    %v1612 = vsel %vm1164, %v1602, %v1585
    %v1613 = vsel %vm1165, %v1602, %v1585
    %v1614 = vsel %vm1164, %v1606, %v1590
    %v1615 = vsel %vm1165, %v1606, %v1590
    %v1616 = vsel %vm664, %v1510, 0
    %v1618 = vsel %vm664, %v1512, 0
    %1620 = vmatprep.subr.bf16.mxu0 %v1569
    %1621 = vmatpush1.bf16.msra.mxu0 %v1568
    %1622 = vmatprep.subr.bf16.mxu0 %v1571
    %1623 = vmatpush1.bf16.msra.mxu0 %v1570
    %1624 = vmatprep.subr.bf16.mxu0 0
    %1625 = vmatpush1.bf16.msra.mxu0 0
    %1626 = vmatprep.subr.bf16.mxu0 0
    %1627 = vmatpush1.bf16.msra.mxu0 0
    %1628 = vmatprep.subr.bf16.mxu0 0
    %1629 = vmatpush1.bf16.msra.mxu0 0
    %1630 = vmatprep.subr.bf16.mxu0 0
    %1631 = vmatpush1.bf16.msra.mxu0 0
    %1632 = vmatprep.subr.bf16.mxu0 0
    %1633 = vmatpush1.bf16.msra.mxu0 0
    %1634 = vmatprep.subr.bf16.mxu0 0
    %1635 = vmatpush1.bf16.msra.mxu0 0
    %1636 = vmatprep.subr.bf16.mxu0 0
    %1637 = vmatpush1.bf16.msra.mxu0 0
    %1638 = vmatprep.subr.bf16.mxu0 0
    %1639 = vmatpush1.bf16.msra.mxu0 0
    %1640 = vmatprep.subr.bf16.mxu0 0
    %1641 = vmatpush1.bf16.msra.mxu0 0
    %1642 = vmatprep.subr.bf16.mxu0 0
    %1643 = vmatpush1.bf16.msra.mxu0 0
    %1644 = vmatprep.subr.bf16.mxu0 0
    %1645 = vmatpush1.bf16.msra.mxu0 0
    %1646 = vmatprep.subr.bf16.mxu0 0
    %1647 = vmatpush1.bf16.msra.mxu0 0
    %1648 = vmatprep.subr.bf16.mxu0 0
    %1649 = vmatpush1.bf16.msra.mxu0 0
    %1650 = vmatprep.subr.bf16.mxu0 0
    %1651 = vmatpush1.bf16.msra.mxu0 0
    %1652 = vmatprep.mubr.bf16.mxu0 0
    %1653 = vmatmul.mubr.bf16.gmra.mrb[0].mxu0 %v1616
    %v1654 = vpop.f32.mrb[0].mxu0
    %v1655 = vadd.f32 %v1608, %v1654
    %v1656 = vpop.f32.mrb[0].mxu0
    %v1657 = vadd.f32 %v1609, %v1656
    %v1658 = vpop.f32.mrb[0].mxu0
    %v1659 = vadd.f32 %v1610, %v1658
    %v1660 = vpop.f32.mrb[0].mxu0
    %v1661 = vadd.f32 %v1611, %v1660
    %1662 = vmatprep.mubr.bf16.mxu0 0
    %1663 = vmatmul.mubr.bf16.gmra.mrb[0].mxu0 %v1618
    %v1664 = vpop.f32.mrb[0].mxu0
    %v1665 = vadd.f32 %v1612, %v1664
    %v1666 = vpop.f32.mrb[0].mxu0
    %v1667 = vadd.f32 %v1613, %v1666
    %v1668 = vpop.f32.mrb[0].mxu0
    %v1669 = vadd.f32 %v1614, %v1668
    %v1670 = vpop.f32.mrb[0].mxu0
    %v1671 = vadd.f32 %v1615, %v1670
    %1672 = vdwg.mxu0
    %1673 = vset.pattern.permute.xlu0 11
    %1674 = vperm.xlu0 %1673, %v523
    %v1675 = vpop.permute.xlu0 %1674
    %1677 = vset.pattern.permute.xlu0 11
    %1678 = vperm.xlu0 %1677, %v524
    %v1679 = vpop.permute.xlu0 %1678
    %1681 = vset.pattern.permute.xlu0 11
    %1682 = vperm.xlu0 %1681, %v525
    %v1683 = vpop.permute.xlu0 %1682
    %1685 = vset.pattern.permute.xlu0 11
    %1686 = vperm.xlu0 %1685, %v526
    %v1687 = vpop.permute.xlu0 %1686
    %v1689 = vadd.f32 %v1655, %v1675
    %v1690 = vadd.f32 %v1657, %v1675
    %v1691 = vadd.f32 %v1659, %v1679
    %v1692 = vadd.f32 %v1661, %v1679
    %v1693 = vadd.f32 %v1665, %v1683
    %v1694 = vadd.f32 %v1667, %v1683
    %v1695 = vadd.f32 %v1669, %v1687
    %v1696 = vadd.f32 %v1671, %v1687
    %v1697 = vmax.f32 %v1689, 0.0
    %v1698 = vmax.f32 %v1690, 0.0
    %v1699 = vmax.f32 %v1691, 0.0
    %v1700 = vmax.f32 %v1692, 0.0
    %v1701 = vmax.f32 %v1693, 0.0
    %v1702 = vmax.f32 %v1694, 0.0
    %v1703 = vmax.f32 %v1695, 0.0
    %v1704 = vmax.f32 %v1696, 0.0
    %v1705 = vpack.c.bf16 %v1699, %v1697
    %v1706 = vpack.c.bf16 %v1700, %v1698
    %v1707 = vpack.c.bf16 %v1703, %v1701
    %v1708 = vpack.c.bf16 %v1704, %v1702
    %1709 = vset.pattern.permute.xlu0 12
    %1710 = vperm.xlu0 %1709, %v523
    %v1711 = vpop.permute.xlu0 %1710
    %1713 = vset.pattern.permute.xlu0 12
    %1714 = vperm.xlu0 %1713, %v524
    %v1715 = vpop.permute.xlu0 %1714
    %1717 = vset.pattern.permute.xlu0 12
    %1718 = vperm.xlu0 %1717, %v525
    %v1719 = vpop.permute.xlu0 %1718
    %1721 = vset.pattern.permute.xlu0 12
    %1722 = vperm.xlu0 %1721, %v526
    %v1723 = vpop.permute.xlu0 %1722
    %1725 = vrot.lane.b32.xlu0 %v804, 32
    %v1726 = vpop.permute.xlu0 %1725
    %1727 = vrot.lane.b32.xlu0 %v805, 32
    %v1728 = vpop.permute.xlu0 %1727
    %v1730 = vsel %vm664, %v1726, 0
    %v1733 = vsel %vm664, %v1728, 0
    %1735 = vmatprep.subr.bf16.mxu0 %v1706
    %1736 = vmatpush1.bf16.msra.mxu0 %v1705
    %1737 = vmatprep.subr.bf16.mxu0 %v1708
    %1738 = vmatpush1.bf16.msra.mxu0 %v1707
    %1739 = vmatprep.subr.bf16.mxu0 0
    %1740 = vmatpush1.bf16.msra.mxu0 0
    %1741 = vmatprep.subr.bf16.mxu0 0
    %1742 = vmatpush1.bf16.msra.mxu0 0
    %1743 = vmatprep.subr.bf16.mxu0 0
    %1744 = vmatpush1.bf16.msra.mxu0 0
    %1745 = vmatprep.subr.bf16.mxu0 0
    %1746 = vmatpush1.bf16.msra.mxu0 0
    %1747 = vmatprep.subr.bf16.mxu0 0
    %1748 = vmatpush1.bf16.msra.mxu0 0
    %1749 = vmatprep.subr.bf16.mxu0 0
    %1750 = vmatpush1.bf16.msra.mxu0 0
    %1751 = vmatprep.subr.bf16.mxu0 0
    %1752 = vmatpush1.bf16.msra.mxu0 0
    %1753 = vmatprep.subr.bf16.mxu0 0
    %1754 = vmatpush1.bf16.msra.mxu0 0
    %1755 = vmatprep.subr.bf16.mxu0 0
    %1756 = vmatpush1.bf16.msra.mxu0 0
    %1757 = vmatprep.subr.bf16.mxu0 0
    %1758 = vmatpush1.bf16.msra.mxu0 0
    %1759 = vmatprep.subr.bf16.mxu0 0
    %1760 = vmatpush1.bf16.msra.mxu0 0
    %1761 = vmatprep.subr.bf16.mxu0 0
    %1762 = vmatpush1.bf16.msra.mxu0 0
    %1763 = vmatprep.subr.bf16.mxu0 0
    %1764 = vmatpush1.bf16.msra.mxu0 0
    %1765 = vmatprep.subr.bf16.mxu0 0
    %1766 = vmatpush1.bf16.msra.mxu0 0
    %1767 = vmatprep.mubr.bf16.mxu0 0
    %1768 = vmatmul.mubr.bf16.gmra.mrb[0].mxu0 %v1730
    %v1769 = vpop.f32.mrb[0].mxu0
    %v1770 = vadd.f32 %v1711, %v1769
    %v1771 = vpop.f32.mrb[0].mxu0
    %v1772 = vadd.f32 %v1711, %v1771
    %v1773 = vpop.f32.mrb[0].mxu0
    %v1774 = vadd.f32 %v1715, %v1773
    %v1775 = vpop.f32.mrb[0].mxu0
    %v1776 = vadd.f32 %v1715, %v1775
    %1777 = vmatprep.mubr.bf16.mxu0 0
    %1778 = vmatmul.mubr.bf16.gmra.mrb[0].mxu0 %v1733
    %v1779 = vpop.f32.mrb[0].mxu0
    %v1780 = vadd.f32 %v1719, %v1779
    %v1781 = vpop.f32.mrb[0].mxu0
    %v1782 = vadd.f32 %v1719, %v1781
    %v1783 = vpop.f32.mrb[0].mxu0
    %v1784 = vadd.f32 %v1723, %v1783
    %v1785 = vpop.f32.mrb[0].mxu0
    %v1786 = vadd.f32 %v1723, %v1785
    %1787 = vdwg.mxu0
    %v1788 = vmax.f32 %v1770, 0.0
    %v1789 = vmax.f32 %v1772, 0.0
    %v1790 = vmax.f32 %v1774, 0.0
    %v1791 = vmax.f32 %v1776, 0.0
    %v1792 = vmax.f32 %v1780, 0.0
    %v1793 = vmax.f32 %v1782, 0.0
    %v1794 = vmax.f32 %v1784, 0.0
    %v1795 = vmax.f32 %v1786, 0.0
    %v1796 = vld [vmem:[%s2 + $0x80] sm:$0xff]
    %v1797 = vpack.c.bf16 %v1796, %v1796
    %v1798 = vpack.c.bf16 %v1790, %v1788
    %v1799 = vpack.c.bf16 %v1791, %v1789
    %v1800 = vpack.c.bf16 %v1794, %v1792
    %v1801 = vpack.c.bf16 %v1795, %v1793
    %v1802 = vld [vmem:[%s2 + $0x90] sm:$0xff]
    %1804 = vset.pattern.permute.xlu0 13
    %1805 = vperm.xlu0 %1804, %v1802
    %v1806 = vpop.permute.xlu0 %1805
    %v1809 = vsel %vm664, %v1797, 0
    %1811 = vmatprep.subr.bf16.mxu0 %v1799
    %1812 = vmatpush1.bf16.msra.mxu0 %v1798
    %1813 = vmatprep.subr.bf16.mxu0 %v1801
    %1814 = vmatpush1.bf16.msra.mxu0 %v1800
    %1815 = vmatprep.subr.bf16.mxu0 0
    %1816 = vmatpush1.bf16.msra.mxu0 0
    %1817 = vmatprep.subr.bf16.mxu0 0
    %1818 = vmatpush1.bf16.msra.mxu0 0
    %1819 = vmatprep.subr.bf16.mxu0 0
    %1820 = vmatpush1.bf16.msra.mxu0 0
    %1821 = vmatprep.subr.bf16.mxu0 0
    %1822 = vmatpush1.bf16.msra.mxu0 0
    %1823 = vmatprep.subr.bf16.mxu0 0
    %1824 = vmatpush1.bf16.msra.mxu0 0
    %1825 = vmatprep.subr.bf16.mxu0 0
    %1826 = vmatpush1.bf16.msra.mxu0 0
    %1827 = vmatprep.subr.bf16.mxu0 0
    %1828 = vmatpush1.bf16.msra.mxu0 0
    %1829 = vmatprep.subr.bf16.mxu0 0
    %1830 = vmatpush1.bf16.msra.mxu0 0
    %1831 = vmatprep.subr.bf16.mxu0 0
    %1832 = vmatpush1.bf16.msra.mxu0 0
    %1833 = vmatprep.subr.bf16.mxu0 0
    %1834 = vmatpush1.bf16.msra.mxu0 0
    %1835 = vmatprep.subr.bf16.mxu0 0
    %1836 = vmatpush1.bf16.msra.mxu0 0
    %1837 = vmatprep.subr.bf16.mxu0 0
    %1838 = vmatpush1.bf16.msra.mxu0 0
    %1839 = vmatprep.subr.bf16.mxu0 0
    %1840 = vmatpush1.bf16.msra.mxu0 0
    %1841 = vmatprep.subr.bf16.mxu0 0
    %1842 = vmatpush1.bf16.msra.mxu0 0
    %1843 = vmatprep.mubr.bf16.mxu0 0
    %1844 = vmatmul.mubr.bf16.gmra.mrb[0].mxu0 %v1809
    %v1845 = vpop.f32.mrb[0].mxu0
    %v1846 = vadd.f32 %v1806, %v1845
    %v1847 = vpop.f32.mrb[0].mxu0
    %v1848 = vadd.f32 %v1806, %v1847
    %v1849 = vpop.f32.mrb[0].mxu0
    %v1850 = vpop.f32.mrb[0].mxu0
    %1851 = vdwg.mxu0
    %1852 = vst [vmem:[%s4] sm:$0xff] %v1846
    %1853 = vst [vmem:[%s4 + $0x8] sm:$0xff] %v1848
    // Predicated region
    $region22: #{guided_point_diffusion_forward.1} parent=1 // pred_check
      _
    $region23: #{guided_point_diffusion_forward.1} parent=1 // pred_check_branch
      %1855 = sbr.rel (0) target = $region25
    $region24: #{guided_point_diffusion_forward.1} parent=1 // pred_region
      _
    $region25: #{guided_point_diffusion_forward.1} parent=1 // pred_fallthru
      _
    // Predicated region
    $region26: #{guided_point_diffusion_forward.1} parent=1 // pred_check
      _
    $region27: #{guided_point_diffusion_forward.1} parent=1 // pred_check_branch
      %1857 = sbr.rel (0) target = $region29
    $region28: #{guided_point_diffusion_forward.1} parent=1 // pred_region
      _
    $region29: #{guided_point_diffusion_forward.1} parent=1 // pred_fallthru
      _
    %1858 = vsyncpa [#allocation3], 1

</llo_original>
